<compile_context>
chip_gen: v5e
topology: v5e:2x2
jax: 0.10.0
libtpu: 0.0.40
codegen_flags: <defaults>
</compile_context>

<pallas_src>
import functools

import jax
import jax.numpy as jnp
from jax.experimental import pallas as pl
from jax.experimental.pallas import tpu as pltpu

LANES = 128


def _vmem_limit_bytes():
    """Per-generation VMEM budget: ~3/4 of physical per-core VMEM."""
    try:
        cap = pltpu.get_tpu_info().vmem_capacity_bytes
    except Exception:
        cap = 64 * 1024 * 1024          # conservative (v7x physical per-TC VMEM)
    return min(int(cap * 3 // 4), 96 * 1024 * 1024)


# ----------------------------------------------------------------------------
# Pallas kernels
# ----------------------------------------------------------------------------
def encoder_stack_kernel(h0_ref, bias_ref,
                         wqkv_ref, bqkv_ref, wo_ref, bo_ref,
                         ln1_g_ref, ln1_b_ref,
                         w1_ref, b1_ref, w2_ref, b2_ref,
                         ln2_g_ref, ln2_b_ref,
                         cls_ref, h_scratch, *, num_heads):
    """One grid step = one (batch element, encoder layer) pair.

    The residual stream lives in `h_scratch` (f32) across the layer axis; the
    per-layer CLS row is written into the resident `cls_ref` output block.
    """
    l = pl.program_id(1)

    @pl.when(l == 0)
    def _():                                            # (re)load residual at layer 0
        h_scratch[...] = h0_ref[...].astype(jnp.float32)

    h32 = h_scratch[...]                                # (S, H) f32 residual
    h_bf = h32.astype(jnp.bfloat16)
    bias = bias_ref[...]                                # (1, S) additive key mask
    S, H = h32.shape
    hd = H // num_heads

    # Fused QKV projection: one MXU pass, K=H, N=3H (bf16 in, f32 accum).
    # 1/sqrt(hd) is folded into the q columns of wqkv/bqkv at prep time.
    qkv = jnp.dot(h_bf, wqkv_ref[...],
                  preferred_element_type=jnp.float32) + bqkv_ref[...]   # (S, 3H)

    def split_heads(x2d):                               # (S, H) -> (nh, S, hd)
        return jnp.transpose(x2d.reshape(S, num_heads, hd), (1, 0, 2))

    q = split_heads(qkv[:, 0 * H:1 * H]).astype(jnp.bfloat16)
    k = split_heads(qkv[:, 1 * H:2 * H]).astype(jnp.bfloat16)
    v = split_heads(qkv[:, 2 * H:3 * H]).astype(jnp.bfloat16)

    # Head-batched attention (no per-head loop, no lane-axis concat).
    s = jnp.einsum('nqd,nkd->nqk', q, k,
                   preferred_element_type=jnp.float32)          # (nh, S, S)
    s = s + bias                                                # mask padded keys
    s = s - jnp.max(s, axis=-1, keepdims=True)
    p = jnp.exp(s)
    p = p * pl.reciprocal(jnp.sum(p, axis=-1, keepdims=True), approx=True)
    ctx = jnp.einsum('nqk,nkd->nqd', p.astype(jnp.bfloat16), v,
                     preferred_element_type=jnp.float32)        # (nh, S, hd)
    ctx = jnp.transpose(ctx, (1, 0, 2)).reshape(S, H).astype(jnp.bfloat16)

    attn = jnp.dot(ctx, wo_ref[...],
                   preferred_element_type=jnp.float32) + bo_ref[...]

    def layer_norm(x, g, b):                                    # stats in f32
        mu = jnp.mean(x, axis=-1, keepdims=True)
        var = jnp.mean((x - mu) ** 2, axis=-1, keepdims=True)
        return (x - mu) * jax.lax.rsqrt(var + 1e-12) * g + b

    h1 = layer_norm(h32 + attn, ln1_g_ref[...], ln1_b_ref[...])

    ff = jnp.dot(h1.astype(jnp.bfloat16), w1_ref[...],
                 preferred_element_type=jnp.float32) + b1_ref[...]
    ff = jax.nn.gelu(ff)
    ff = jnp.dot(ff.astype(jnp.bfloat16), w2_ref[...],
                 preferred_element_type=jnp.float32) + b2_ref[...]

    out = layer_norm(h1 + ff, ln2_g_ref[...], ln2_b_ref[...])

    # Carry residual to the next layer; write this layer's CLS row into the
    # resident (L, H) output block (masked full-block write: no dynamic-slice
    # store, layout-safe).
    h_scratch[...] = out
    Lr, Hr = cls_ref.shape
    row_ids = jax.lax.broadcasted_iota(jnp.int32, (Lr, Hr), 0)
    cls_row = out[0:1, :].astype(cls_ref.dtype)                 # (1, H)
    cls_ref[...] = jnp.where(row_ids == l, cls_row, cls_ref[...])


def classifier_head_kernel(feat_ref, w1_ref, b1_ref, w2_ref, b2_ref,
                           out_ref, acc_ref):
    """K-tiled head: step j computes a TN-slice of the hidden activation and
    immediately contracts it into the logits accumulator."""
    j = pl.program_id(0)

    @pl.when(j == 0)
    def _():
        acc_ref[...] = jnp.zeros_like(acc_ref)

    # dropout == identity at inference (eval-mode semantics)
    hdn = jnp.dot(feat_ref[...], w1_ref[...],
                  preferred_element_type=jnp.float32) + b1_ref[...]
    hdn = jnp.maximum(hdn, 0.0)                         # ReLU
    acc_ref[...] += jnp.dot(hdn.astype(jnp.bfloat16), w2_ref[...],
                            preferred_element_type=jnp.float32)

    @pl.when(j == pl.num_programs(0) - 1)
    def _():
        out_ref[...] = acc_ref[...] + b2_ref[...]       # (B, padded_labels)


# ----------------------------------------------------------------------------
# pallas_call wrappers
# ----------------------------------------------------------------------------
def encoder_stack(h0, bias, p, num_heads):
    """Run all L encoder layers in one pallas_call; returns per-layer CLS rows
    of shape (B, L, H) (bf16)."""
    B, S, H = h0.shape
    L = p['wqkv'].shape[0]
    F = p['w1'].shape[2]

    weight_names = ['wqkv', 'bqkv', 'wo', 'bo', 'ln1_g', 'ln1_b',
                    'w1', 'b1', 'w2', 'b2', 'ln2_g', 'ln2_b']
    weights = [p[n] for n in weight_names]

    def w_spec(a):          # stacked [L, ...] weights indexed by the L grid axis
        return pl.BlockSpec((None,) + a.shape[1:],
                            lambda b, l: (l,) + (0,) * (a.ndim - 1))

    in_specs = ([pl.BlockSpec((None, S, H), lambda b, l: (b, 0, 0)),   # h0
                 pl.BlockSpec((None, 1, S), lambda b, l: (b, 0, 0))]   # key mask
                + [w_spec(a) for a in weights])

    flops = int(B * L * (2 * S * H * 3 * H + 4 * S * S * H + 2 * S * H * H
                         + 4 * S * H * F))
    transc = int(B * L * (num_heads * S * S + S * F))
    bytes_accessed = int(B * sum(int(a.size) * a.dtype.itemsize for a in weights)
                         + 2 * h0.size * h0.dtype.itemsize
                         + bias.size * bias.dtype.itemsize
                         + B * L * H * 2)

    return pl.pallas_call(
        functools.partial(encoder_stack_kernel, num_heads=num_heads),
        grid=(B, L),
        in_specs=in_specs,
        # CLS output block is resident across the L ("arbitrary") axis.
        out_specs=pl.BlockSpec((None, L, H), lambda b, l: (b, 0, 0)),
        out_shape=jax.ShapeDtypeStruct((B, L, H), jnp.bfloat16),
        scratch_shapes=[pltpu.VMEM((S, H), jnp.float32)],   # resident residual
        compiler_params=pltpu.CompilerParams(
            dimension_semantics=("parallel", "arbitrary"),   # megacore over B
            vmem_limit_bytes=_vmem_limit_bytes()),
        cost_estimate=pl.CostEstimate(flops=flops, transcendentals=transc,
                                      bytes_accessed=bytes_accessed),
    )(h0, bias, *weights)


def classifier_head(feats, w1, b1, w2, b2, *, tn=512):
    B, Hcat = feats.shape
    n_pad = w2.shape[1]                                 # lane-padded label dim
    tn = min(tn, Hcat)
    assert Hcat % tn == 0
    nt = Hcat // tn

    in_specs = [
        pl.BlockSpec((B, Hcat), lambda j: (0, 0)),      # features (small)
        pl.BlockSpec((Hcat, tn), lambda j: (0, j)),     # hl weight N-tile
        pl.BlockSpec((1, tn), lambda j: (0, j)),        # hl bias tile
        pl.BlockSpec((tn, n_pad), lambda j: (j, 0)),    # last_l weight K-tile
        pl.BlockSpec((1, n_pad), lambda j: (0, 0)),     # last_l bias
    ]
    return pl.pallas_call(
        classifier_head_kernel,
        grid=(nt,),
        in_specs=in_specs,
        out_specs=pl.BlockSpec((B, n_pad), lambda j: (0, 0)),
        out_shape=jax.ShapeDtypeStruct((B, n_pad), jnp.float32),
        scratch_shapes=[pltpu.VMEM((B, n_pad), jnp.float32)],
        compiler_params=pltpu.CompilerParams(
            dimension_semantics=("arbitrary",),
            vmem_limit_bytes=_vmem_limit_bytes()),
    )(feats, w1, b1, w2, b2)


# ----------------------------------------------------------------------------
# Parameter init (deterministic, synthetic), prep (stack/fuse/cast), forward
# ----------------------------------------------------------------------------
def _xavier(key, fan_in, fan_out):
    limit = (6.0 / (fan_in + fan_out)) ** 0.5
    return jax.random.uniform(key, (fan_in, fan_out), jnp.float32, -limit, limit)


def init_params(key, vocab, H, F, L, max_pos, nb_labels):
    keys = jax.random.split(key, 8 + L * 8)
    ki = iter(keys)
    p = {
        'word_emb': 0.02 * jax.random.normal(next(ki), (vocab, H), jnp.float32),
        'pos_emb': 0.02 * jax.random.normal(next(ki), (max_pos, H), jnp.float32),
        'emb_ln_g': jnp.ones((1, H), jnp.float32),
        'emb_ln_b': jnp.zeros((1, H), jnp.float32),
        'layers': [],
    }
    for _ in range(L):
        lp = {
            'wq': _xavier(next(ki), H, H), 'bq': jnp.zeros((1, H), jnp.float32),
            'wk': _xavier(next(ki), H, H), 'bk': jnp.zeros((1, H), jnp.float32),
            'wv': _xavier(next(ki), H, H), 'bv': jnp.zeros((1, H), jnp.float32),
            'wo': _xavier(next(ki), H, H), 'bo': jnp.zeros((1, H), jnp.float32),
            'ln1_g': jnp.ones((1, H), jnp.float32),
            'ln1_b': jnp.zeros((1, H), jnp.float32),
            'w1': _xavier(next(ki), H, F), 'b1': jnp.zeros((1, F), jnp.float32),
            'w2': _xavier(next(ki), F, H), 'b2': jnp.zeros((1, H), jnp.float32),
            'ln2_g': jnp.ones((1, H), jnp.float32),
            'ln2_b': jnp.zeros((1, H), jnp.float32),
        }
        p['layers'].append(lp)
    hidden_dim = 4 * H                      # == tr_model.config.hidden_size * 4
    p['hl_w'] = _xavier(next(ki), hidden_dim, hidden_dim)      # xavier_uniform_
    p['hl_b'] = jnp.zeros((1, hidden_dim), jnp.float32)
    p['ll_w'] = _xavier(next(ki), hidden_dim, nb_labels)       # xavier_uniform_
    p['ll_b'] = jnp.zeros((1, nb_labels), jnp.float32)
    return p


def prepare_params(params, num_heads):
    """Stack per-layer params into [L, ...] arrays, fuse QKV (fold 1/sqrt(hd)
    into q), cast matmul weights to bf16, lane-pad the classifier output."""
    H = params['layers'][0]['wq'].shape[0]
    hd = H // num_heads
    scale = jnp.float32(1.0 / (hd ** 0.5))

    def stack(fn):
        return jnp.stack([fn(lp) for lp in params['layers']], axis=0)

    prep = {
        'word_emb': params['word_emb'],
        'pos_emb': params['pos_emb'],
        'emb_ln_g': params['emb_ln_g'],
        'emb_ln_b': params['emb_ln_b'],
        'wqkv': stack(lambda lp: jnp.concatenate(
            [lp['wq'] * scale, lp['wk'], lp['wv']], axis=1)).astype(jnp.bfloat16),
        'bqkv': stack(lambda lp: jnp.concatenate(
            [lp['bq'] * scale, lp['bk'], lp['bv']], axis=1)),
        'wo': stack(lambda lp: lp['wo']).astype(jnp.bfloat16),
        'bo': stack(lambda lp: lp['bo']),
        'ln1_g': stack(lambda lp: lp['ln1_g']),
        'ln1_b': stack(lambda lp: lp['ln1_b']),
        'w1': stack(lambda lp: lp['w1']).astype(jnp.bfloat16),
        'b1': stack(lambda lp: lp['b1']),
        'w2': stack(lambda lp: lp['w2']).astype(jnp.bfloat16),
        'b2': stack(lambda lp: lp['b2']),
        'ln2_g': stack(lambda lp: lp['ln2_g']),
        'ln2_b': stack(lambda lp: lp['ln2_b']),
    }
    nb_labels = params['ll_w'].shape[1]
    pad = (-nb_labels) % LANES
    prep['hl_w'] = params['hl_w'].astype(jnp.bfloat16)
    prep['hl_b'] = params['hl_b']
    prep['ll_w'] = jnp.pad(params['ll_w'], ((0, 0), (0, pad))).astype(jnp.bfloat16)
    prep['ll_b'] = jnp.pad(params['ll_b'], ((0, 0), (0, pad)))
    return prep


def transformer_classifier_forward(params, ids, mask, num_heads, nb_labels):
    B, S = ids.shape
    # --- synthetic tr_model: embeddings (gather is glue, stays in plain JAX) ---
    h = params['word_emb'][ids] + params['pos_emb'][:S][None, :, :]
    mu = jnp.mean(h, axis=-1, keepdims=True)
    var = jnp.mean((h - mu) ** 2, axis=-1, keepdims=True)
    h = (h - mu) * jax.lax.rsqrt(var + 1e-12) * params['emb_ln_g'] + params['emb_ln_b']
    h_emb = h.astype(jnp.bfloat16)                        # bf16 activations

    bias = ((1.0 - mask.astype(jnp.float32)) * -1e9).reshape(B, 1, S)

    # All L encoder layers in one fused Pallas call -> per-layer CLS rows.
    cls_all = encoder_stack(h_emb, bias, params, num_heads)     # (B, L, H) bf16
    L = cls_all.shape[1]

    # hidden_states == [embeddings] + [layer 0 .. layer L-1]; the classifier
    # concatenates the CLS token of the last 4 entries, newest first.
    cls_list = [h_emb[:, 0, :]] + [cls_all[:, l, :] for l in range(L)]
    feats = jnp.concatenate([cls_list[-1], cls_list[-2],
                             cls_list[-3], cls_list[-4]], axis=-1).astype(jnp.bfloat16)
    # nn.Dropout omitted — eval-mode dropout is identity.
    logits_padded = classifier_head(feats, params['hl_w'], params['hl_b'],
                                    params['ll_w'], params['ll_b'])
    return logits_padded[:, :nb_labels]


if __name__ == "__main__":
    B, S, H = 2, 8, 32
    NUM_HEADS, LAYERS = 4, 4
    VOCAB, MAX_POS, NB_LABELS = 100, 64, 3
    FFN = 4 * H

    key = jax.random.PRNGKey(0)
    k_param, k_ids = jax.random.split(key)
    params_raw = init_params(k_param, VOCAB, H, FFN, LAYERS, MAX_POS, NB_LABELS)
    params = prepare_params(params_raw, NUM_HEADS)

    ids = jax.random.randint(k_ids, (B, S), 0, VOCAB, dtype=jnp.int32)
    mask = jnp.ones((B, S), jnp.int32).at[1, 6:].set(0)   # some padding in row 1

    logits = transformer_classifier_forward(params, ids, mask, NUM_HEADS, NB_LABELS)
    jax.block_until_ready(logits)
    assert logits.shape == (B, NB_LABELS) and logits.dtype == jnp.float32
    print("KERNEL_OK")
</pallas_src>

<mosaic_0001>
module attributes {stable_mosaic.version = 11 : i64} {
  func.func @encoder_stack_kernel(%arg0: i32, %arg1: i32, %arg2: memref<1x8x32xbf16, #tpu.memory_space<vmem>>, %arg3: memref<1x1x8xf32, #tpu.memory_space<vmem>>, %arg4: memref<1x32x96xbf16, #tpu.memory_space<vmem>>, %arg5: memref<1x1x96xf32, #tpu.memory_space<vmem>>, %arg6: memref<1x32x32xbf16, #tpu.memory_space<vmem>>, %arg7: memref<1x1x32xf32, #tpu.memory_space<vmem>>, %arg8: memref<1x1x32xf32, #tpu.memory_space<vmem>>, %arg9: memref<1x1x32xf32, #tpu.memory_space<vmem>>, %arg10: memref<1x32x128xbf16, #tpu.memory_space<vmem>>, %arg11: memref<1x1x128xf32, #tpu.memory_space<vmem>>, %arg12: memref<1x128x32xbf16, #tpu.memory_space<vmem>>, %arg13: memref<1x1x32xf32, #tpu.memory_space<vmem>>, %arg14: memref<1x1x32xf32, #tpu.memory_space<vmem>>, %arg15: memref<1x1x32xf32, #tpu.memory_space<vmem>>, %arg16: memref<1x4x32xbf16, #tpu.memory_space<vmem>>, %arg17: memref<8x32xf32, #tpu.memory_space<vmem>>) attributes {dimension_semantics = [#tpu.dimension_semantics<parallel>, #tpu.dimension_semantics<arbitrary>], iteration_bounds = array<i64: 2, 4>, scalar_prefetch = 0 : i64, scratch_operands = 1 : i64, tpu.core_type = #tpu.core_type<tc>, window_params = [{transform_indices = @transform_0, window_bounds = array<i64: 1, 8, 32>}, {transform_indices = @transform_1, window_bounds = array<i64: 1, 1, 8>}, {transform_indices = @transform_2, window_bounds = array<i64: 1, 32, 96>}, {transform_indices = @transform_3, window_bounds = array<i64: 1, 1, 96>}, {transform_indices = @transform_4, window_bounds = array<i64: 1, 32, 32>}, {transform_indices = @transform_5, window_bounds = array<i64: 1, 1, 32>}, {transform_indices = @transform_6, window_bounds = array<i64: 1, 1, 32>}, {transform_indices = @transform_7, window_bounds = array<i64: 1, 1, 32>}, {transform_indices = @transform_8, window_bounds = array<i64: 1, 32, 128>}, {transform_indices = @transform_9, window_bounds = array<i64: 1, 1, 128>}, {transform_indices = @transform_10, window_bounds = array<i64: 1, 128, 32>}, {transform_indices = @transform_11, window_bounds = array<i64: 1, 1, 32>}, {transform_indices = @transform_12, window_bounds = array<i64: 1, 1, 32>}, {transform_indices = @transform_13, window_bounds = array<i64: 1, 1, 32>}, {transform_indices = @transform_14, window_bounds = array<i64: 1, 4, 32>}]} {
    %c0_i32 = arith.constant 0 : i32
    %0 = arith.cmpi eq, %arg1, %c0_i32 : i32
    %1 = arith.extui %0 : i1 to i32
    %c0_i32_0 = arith.constant 0 : i32
    %2 = arith.cmpi ne, %1, %c0_i32_0 : i32
    scf.if %2 {
      %c0_70 = arith.constant 0 : index
      %c0_71 = arith.constant 0 : index
      %c0_72 = arith.constant 0 : index
      %149 = vector.load %arg2[%c0_70, %c0_71, %c0_72] : memref<1x8x32xbf16, #tpu.memory_space<vmem>>, vector<1x8x32xbf16>
      %150 = vector.shape_cast %149 : vector<1x8x32xbf16> to vector<8x32xbf16>
      %151 = arith.extf %150 : vector<8x32xbf16> to vector<8x32xf32>
      %c0_73 = arith.constant 0 : index
      %c0_74 = arith.constant 0 : index
      %152 = vector.load %arg17[%c0_73, %c0_74] : memref<8x32xf32, #tpu.memory_space<vmem>>, vector<8x32xf32>
      tpu.vector_store %arg17[%c0_73, %c0_74], %151 {strides = array<i32>} : memref<8x32xf32, #tpu.memory_space<vmem>>, vector<8x32xf32>,
    } else {
    }
    %c0 = arith.constant 0 : index
    %c0_1 = arith.constant 0 : index
    %3 = vector.load %arg17[%c0, %c0_1] : memref<8x32xf32, #tpu.memory_space<vmem>>, vector<8x32xf32>
    %4 = arith.truncf %3 : vector<8x32xf32> to vector<8x32xbf16>
    %c0_2 = arith.constant 0 : index
    %c0_3 = arith.constant 0 : index
    %c0_4 = arith.constant 0 : index
    %5 = vector.load %arg3[%c0_2, %c0_3, %c0_4] : memref<1x1x8xf32, #tpu.memory_space<vmem>>, vector<1x1x8xf32>
    %6 = vector.shape_cast %5 : vector<1x1x8xf32> to vector<1x8xf32>
    %c0_5 = arith.constant 0 : index
    %c0_6 = arith.constant 0 : index
    %c0_7 = arith.constant 0 : index
    %7 = vector.load %arg4[%c0_5, %c0_6, %c0_7] : memref<1x32x96xbf16, #tpu.memory_space<vmem>>, vector<1x32x96xbf16>
    %8 = vector.shape_cast %7 : vector<1x32x96xbf16> to vector<32x96xbf16>
    %cst = arith.constant dense<0.000000e+00> : vector<8x96xf32>
    %9 = tpu.matmul %4, %8, %cst {dimension_numbers = #tpu.dot_dimension_numbers<[1], [0], [0], [1], [0, 0, 1, 1], [], []>} : vector<8x32xbf16>, vector<32x96xbf16>, vector<8x96xf32> -> vector<8x96xf32>
    %c0_8 = arith.constant 0 : index
    %c0_9 = arith.constant 0 : index
    %c0_10 = arith.constant 0 : index
    %10 = vector.load %arg5[%c0_8, %c0_9, %c0_10] : memref<1x1x96xf32, #tpu.memory_space<vmem>>, vector<1x1x96xf32>
    %11 = vector.shape_cast %10 : vector<1x1x96xf32> to vector<1x96xf32>
    %12 = vector.broadcast %11 : vector<1x96xf32> to vector<8x96xf32>
    %13 = arith.addf %9, %12 : vector<8x96xf32>
    %14 = vector.extract_strided_slice %13 {offsets = [0, 0], sizes = [8, 32], strides = [1, 1]} : vector<8x96xf32> to vector<8x32xf32>
    %15 = vector.shape_cast %14 : vector<8x32xf32> to vector<8x4x8xf32>
    %16 = tpu.transpose %15, [1, 0, 2] : vector<8x4x8xf32> -> vector<4x8x8xf32>
    %17 = arith.truncf %16 : vector<4x8x8xf32> to vector<4x8x8xbf16>
    %18 = vector.extract_strided_slice %13 {offsets = [0, 32], sizes = [8, 32], strides = [1, 1]} : vector<8x96xf32> to vector<8x32xf32>
    %19 = vector.shape_cast %18 : vector<8x32xf32> to vector<8x4x8xf32>
    %20 = tpu.transpose %19, [1, 0, 2] : vector<8x4x8xf32> -> vector<4x8x8xf32>
    %21 = arith.truncf %20 : vector<4x8x8xf32> to vector<4x8x8xbf16>
    %22 = vector.extract_strided_slice %13 {offsets = [0, 64], sizes = [8, 32], strides = [1, 1]} : vector<8x96xf32> to vector<8x32xf32>
    %23 = vector.shape_cast %22 : vector<8x32xf32> to vector<8x4x8xf32>
    %24 = tpu.transpose %23, [1, 0, 2] : vector<8x4x8xf32> -> vector<4x8x8xf32>
    %25 = arith.truncf %24 : vector<4x8x8xf32> to vector<4x8x8xbf16>
    "tpu.trace_start"() <{level = 10 : i32, message = "nqd,nkd->nqk"}> : () -> ()
    %cst_11 = arith.constant dense<0.000000e+00> : vector<4x8x8xf32>
    %26 = tpu.matmul %17, %21, %cst_11 {dimension_numbers = #tpu.dot_dimension_numbers<[2], [2], [1], [1], [0, 0, 0, 1, 1, 1], [0], [0]>} : vector<4x8x8xbf16>, vector<4x8x8xbf16>, vector<4x8x8xf32> -> vector<4x8x8xf32>
    "tpu.trace_stop"() : () -> ()
    %27 = vector.shape_cast %6 : vector<1x8xf32> to vector<1x1x8xf32>
    %28 = vector.broadcast %27 : vector<1x1x8xf32> to vector<4x8x8xf32>
    %29 = arith.addf %26, %28 : vector<4x8x8xf32>
    %cst_12 = arith.constant dense<0xFF800000> : vector<4x8xf32>
    %30 = vector.multi_reduction <maximumf>, %29, %cst_12 [2] : vector<4x8x8xf32> to vector<4x8xf32>
    %31 = vector.shape_cast %30 : vector<4x8xf32> to vector<4x8x1xf32>
    %32 = vector.broadcast %31 : vector<4x8x1xf32> to vector<4x8x8xf32>
    %33 = arith.subf %29, %32 : vector<4x8x8xf32>
    %34 = math.exp %33 : vector<4x8x8xf32>
    %cst_13 = arith.constant dense<0.000000e+00> : vector<4x8xf32>
    %35 = vector.multi_reduction <add>, %34, %cst_13 [2] : vector<4x8x8xf32> to vector<4x8xf32>
    %36 = vector.shape_cast %35 : vector<4x8xf32> to vector<4x8x1xf32>
    %37 = tpu.reciprocal %36 {approx = true} : vector<4x8x1xf32> -> vector<4x8x1xf32>
    %38 = vector.broadcast %37 : vector<4x8x1xf32> to vector<4x8x8xf32>
    %39 = arith.mulf %34, %38 : vector<4x8x8xf32>
    %40 = arith.truncf %39 : vector<4x8x8xf32> to vector<4x8x8xbf16>
    "tpu.trace_start"() <{level = 10 : i32, message = "nqk,nkd->nqd"}> : () -> ()
    %cst_14 = arith.constant dense<0.000000e+00> : vector<4x8x8xf32>
    %41 = tpu.matmul %40, %25, %cst_14 {dimension_numbers = #tpu.dot_dimension_numbers<[2], [1], [1], [2], [0, 0, 0, 1, 1, 2], [0], [0]>} : vector<4x8x8xbf16>, vector<4x8x8xbf16>, vector<4x8x8xf32> -> vector<4x8x8xf32>
    "tpu.trace_stop"() : () -> ()
    %42 = tpu.transpose %41, [1, 0, 2] : vector<4x8x8xf32> -> vector<8x4x8xf32>
    %43 = vector.shape_cast %42 : vector<8x4x8xf32> to vector<8x32xf32>
    %44 = arith.truncf %43 : vector<8x32xf32> to vector<8x32xbf16>
    %c0_15 = arith.constant 0 : index
    %c0_16 = arith.constant 0 : index
    %c0_17 = arith.constant 0 : index
    %45 = vector.load %arg6[%c0_15, %c0_16, %c0_17] : memref<1x32x32xbf16, #tpu.memory_space<vmem>>, vector<1x32x32xbf16>
    %46 = vector.shape_cast %45 : vector<1x32x32xbf16> to vector<32x32xbf16>
    %cst_18 = arith.constant dense<0.000000e+00> : vector<8x32xf32>
    %47 = tpu.matmul %44, %46, %cst_18 {dimension_numbers = #tpu.dot_dimension_numbers<[1], [0], [0], [1], [0, 0, 1, 1], [], []>} : vector<8x32xbf16>, vector<32x32xbf16>, vector<8x32xf32> -> vector<8x32xf32>
    %c0_19 = arith.constant 0 : index
    %c0_20 = arith.constant 0 : index
    %c0_21 = arith.constant 0 : index
    %48 = vector.load %arg7[%c0_19, %c0_20, %c0_21] : memref<1x1x32xf32, #tpu.memory_space<vmem>>, vector<1x1x32xf32>
    %49 = vector.shape_cast %48 : vector<1x1x32xf32> to vector<1x32xf32>
    %50 = vector.broadcast %49 : vector<1x32xf32> to vector<8x32xf32>
    %51 = arith.addf %47, %50 : vector<8x32xf32>
    %52 = arith.addf %3, %51 : vector<8x32xf32>
    %c0_22 = arith.constant 0 : index
    %c0_23 = arith.constant 0 : index
    %c0_24 = arith.constant 0 : index
    %53 = vector.load %arg8[%c0_22, %c0_23, %c0_24] : memref<1x1x32xf32, #tpu.memory_space<vmem>>, vector<1x1x32xf32>
    %54 = vector.shape_cast %53 : vector<1x1x32xf32> to vector<1x32xf32>
    %c0_25 = arith.constant 0 : index
    %c0_26 = arith.constant 0 : index
    %c0_27 = arith.constant 0 : index
    %55 = vector.load %arg9[%c0_25, %c0_26, %c0_27] : memref<1x1x32xf32, #tpu.memory_space<vmem>>, vector<1x1x32xf32>
    %56 = vector.shape_cast %55 : vector<1x1x32xf32> to vector<1x32xf32>
    %cst_28 = arith.constant dense<0.000000e+00> : vector<8xf32>
    %57 = vector.multi_reduction <add>, %52, %cst_28 [1] : vector<8x32xf32> to vector<8xf32>
    %58 = vector.shape_cast %57 : vector<8xf32> to vector<8x1xf32>
    %cst_29 = arith.constant 3.200000e+01 : f32
    %59 = vector.broadcast %cst_29 : f32 to vector<8x1xf32>
    %60 = arith.divf %58, %59 : vector<8x1xf32>
    %61 = vector.broadcast %60 : vector<8x1xf32> to vector<8x32xf32>
    %62 = arith.subf %52, %61 : vector<8x32xf32>
    %63 = arith.mulf %62, %62 : vector<8x32xf32>
    %cst_30 = arith.constant dense<0.000000e+00> : vector<8xf32>
    %64 = vector.multi_reduction <add>, %63, %cst_30 [1] : vector<8x32xf32> to vector<8xf32>
    %65 = vector.shape_cast %64 : vector<8xf32> to vector<8x1xf32>
    %cst_31 = arith.constant 3.200000e+01 : f32
    %66 = vector.broadcast %cst_31 : f32 to vector<8x1xf32>
    %67 = arith.divf %65, %66 : vector<8x1xf32>
    %68 = vector.broadcast %60 : vector<8x1xf32> to vector<8x32xf32>
    %69 = arith.subf %52, %68 : vector<8x32xf32>
    %cst_32 = arith.constant 9.99999996E-13 : f32
    %70 = vector.broadcast %cst_32 : f32 to vector<8x1xf32>
    %71 = arith.addf %67, %70 : vector<8x1xf32>
    %72 = math.rsqrt %71 : vector<8x1xf32>
    %73 = vector.broadcast %72 : vector<8x1xf32> to vector<8x32xf32>
    %74 = arith.mulf %69, %73 : vector<8x32xf32>
    %75 = vector.broadcast %54 : vector<1x32xf32> to vector<8x32xf32>
    %76 = arith.mulf %74, %75 : vector<8x32xf32>
    %77 = vector.broadcast %56 : vector<1x32xf32> to vector<8x32xf32>
    %78 = arith.addf %76, %77 : vector<8x32xf32>
    %79 = arith.truncf %78 : vector<8x32xf32> to vector<8x32xbf16>
    %c0_33 = arith.constant 0 : index
    %c0_34 = arith.constant 0 : index
    %c0_35 = arith.constant 0 : index
    %80 = vector.load %arg10[%c0_33, %c0_34, %c0_35] : memref<1x32x128xbf16, #tpu.memory_space<vmem>>, vector<1x32x128xbf16>
    %81 = vector.shape_cast %80 : vector<1x32x128xbf16> to vector<32x128xbf16>
    %cst_36 = arith.constant dense<0.000000e+00> : vector<8x128xf32>
    %82 = tpu.matmul %79, %81, %cst_36 {dimension_numbers = #tpu.dot_dimension_numbers<[1], [0], [0], [1], [0, 0, 1, 1], [], []>} : vector<8x32xbf16>, vector<32x128xbf16>, vector<8x128xf32> -> vector<8x128xf32>
    %c0_37 = arith.constant 0 : index
    %c0_38 = arith.constant 0 : index
    %c0_39 = arith.constant 0 : index
    %83 = vector.load %arg11[%c0_37, %c0_38, %c0_39] : memref<1x1x128xf32, #tpu.memory_space<vmem>>, vector<1x1x128xf32>
    %84 = vector.shape_cast %83 : vector<1x1x128xf32> to vector<1x128xf32>
    %85 = vector.broadcast %84 : vector<1x128xf32> to vector<8x128xf32>
    %86 = arith.addf %82, %85 : vector<8x128xf32>
    %87 = arith.mulf %86, %86 : vector<8x128xf32>
    %88 = arith.mulf %86, %87 : vector<8x128xf32>
    %cst_40 = arith.constant 4.471500e-02 : f32
    %89 = vector.broadcast %cst_40 : f32 to vector<8x128xf32>
    %90 = arith.mulf %89, %88 : vector<8x128xf32>
    %91 = arith.addf %86, %90 : vector<8x128xf32>
    %cst_41 = arith.constant 0.797884583 : f32
    %92 = vector.broadcast %cst_41 : f32 to vector<8x128xf32>
    %93 = arith.mulf %92, %91 : vector<8x128xf32>
    %94 = math.tanh %93 : vector<8x128xf32>
    %cst_42 = arith.constant 1.000000e+00 : f32
    %95 = vector.broadcast %cst_42 : f32 to vector<8x128xf32>
    %96 = arith.addf %95, %94 : vector<8x128xf32>
    %cst_43 = arith.constant 5.000000e-01 : f32
    %97 = vector.broadcast %cst_43 : f32 to vector<8x128xf32>
    %98 = arith.mulf %97, %96 : vector<8x128xf32>
    %99 = arith.mulf %86, %98 : vector<8x128xf32>
    %100 = arith.truncf %99 : vector<8x128xf32> to vector<8x128xbf16>
    %c0_44 = arith.constant 0 : index
    %c0_45 = arith.constant 0 : index
    %c0_46 = arith.constant 0 : index
    %101 = vector.load %arg12[%c0_44, %c0_45, %c0_46] : memref<1x128x32xbf16, #tpu.memory_space<vmem>>, vector<1x128x32xbf16>
    %102 = vector.shape_cast %101 : vector<1x128x32xbf16> to vector<128x32xbf16>
    %cst_47 = arith.constant dense<0.000000e+00> : vector<8x32xf32>
    %103 = tpu.matmul %100, %102, %cst_47 {dimension_numbers = #tpu.dot_dimension_numbers<[1], [0], [0], [1], [0, 0, 1, 1], [], []>} : vector<8x128xbf16>, vector<128x32xbf16>, vector<8x32xf32> -> vector<8x32xf32>
    %c0_48 = arith.constant 0 : index
    %c0_49 = arith.constant 0 : index
    %c0_50 = arith.constant 0 : index
    %104 = vector.load %arg13[%c0_48, %c0_49, %c0_50] : memref<1x1x32xf32, #tpu.memory_space<vmem>>, vector<1x1x32xf32>
    %105 = vector.shape_cast %104 : vector<1x1x32xf32> to vector<1x32xf32>
    %106 = vector.broadcast %105 : vector<1x32xf32> to vector<8x32xf32>
    %107 = arith.addf %103, %106 : vector<8x32xf32>
    %108 = arith.addf %78, %107 : vector<8x32xf32>
    %c0_51 = arith.constant 0 : index
    %c0_52 = arith.constant 0 : index
    %c0_53 = arith.constant 0 : index
    %109 = vector.load %arg14[%c0_51, %c0_52, %c0_53] : memref<1x1x32xf32, #tpu.memory_space<vmem>>, vector<1x1x32xf32>
    %110 = vector.shape_cast %109 : vector<1x1x32xf32> to vector<1x32xf32>
    %c0_54 = arith.constant 0 : index
    %c0_55 = arith.constant 0 : index
    %c0_56 = arith.constant 0 : index
    %111 = vector.load %arg15[%c0_54, %c0_55, %c0_56] : memref<1x1x32xf32, #tpu.memory_space<vmem>>, vector<1x1x32xf32>
    %112 = vector.shape_cast %111 : vector<1x1x32xf32> to vector<1x32xf32>
    %cst_57 = arith.constant dense<0.000000e+00> : vector<8xf32>
    %113 = vector.multi_reduction <add>, %108, %cst_57 [1] : vector<8x32xf32> to vector<8xf32>
    %114 = vector.shape_cast %113 : vector<8xf32> to vector<8x1xf32>
    %cst_58 = arith.constant 3.200000e+01 : f32
    %115 = vector.broadcast %cst_58 : f32 to vector<8x1xf32>
    %116 = arith.divf %114, %115 : vector<8x1xf32>
    %117 = vector.broadcast %116 : vector<8x1xf32> to vector<8x32xf32>
    %118 = arith.subf %108, %117 : vector<8x32xf32>
    %119 = arith.mulf %118, %118 : vector<8x32xf32>
    %cst_59 = arith.constant dense<0.000000e+00> : vector<8xf32>
    %120 = vector.multi_reduction <add>, %119, %cst_59 [1] : vector<8x32xf32> to vector<8xf32>
    %121 = vector.shape_cast %120 : vector<8xf32> to vector<8x1xf32>
    %cst_60 = arith.constant 3.200000e+01 : f32
    %122 = vector.broadcast %cst_60 : f32 to vector<8x1xf32>
    %123 = arith.divf %121, %122 : vector<8x1xf32>
    %124 = vector.broadcast %116 : vector<8x1xf32> to vector<8x32xf32>
    %125 = arith.subf %108, %124 : vector<8x32xf32>
    %cst_61 = arith.constant 9.99999996E-13 : f32
    %126 = vector.broadcast %cst_61 : f32 to vector<8x1xf32>
    %127 = arith.addf %123, %126 : vector<8x1xf32>
    %128 = math.rsqrt %127 : vector<8x1xf32>
    %129 = vector.broadcast %128 : vector<8x1xf32> to vector<8x32xf32>
    %130 = arith.mulf %125, %129 : vector<8x32xf32>
    %131 = vector.broadcast %110 : vector<1x32xf32> to vector<8x32xf32>
    %132 = arith.mulf %130, %131 : vector<8x32xf32>
    %133 = vector.broadcast %112 : vector<1x32xf32> to vector<8x32xf32>
    %134 = arith.addf %132, %133 : vector<8x32xf32>
    %c0_62 = arith.constant 0 : index
    %c0_63 = arith.constant 0 : index
    %135 = vector.load %arg17[%c0_62, %c0_63] : memref<8x32xf32, #tpu.memory_space<vmem>>, vector<8x32xf32>
    tpu.vector_store %arg17[%c0_62, %c0_63], %134 {strides = array<i32>} : memref<8x32xf32, #tpu.memory_space<vmem>>, vector<8x32xf32>,
    %136 = tpu.iota {dimensions = array<i32: 0>} : vector<4x32xi32>
    %137 = vector.extract_strided_slice %134 {offsets = [0, 0], sizes = [1, 32], strides = [1, 1]} : vector<8x32xf32> to vector<1x32xf32>
    %138 = arith.truncf %137 : vector<1x32xf32> to vector<1x32xbf16>
    %139 = vector.broadcast %arg1 : i32 to vector<4x32xi32>
    %140 = arith.cmpi eq, %136, %139 : vector<4x32xi32>
    %c0_64 = arith.constant 0 : index
    %c0_65 = arith.constant 0 : index
    %c0_66 = arith.constant 0 : index
    %141 = vector.load %arg16[%c0_64, %c0_65, %c0_66] : memref<1x4x32xbf16, #tpu.memory_space<vmem>>, vector<1x4x32xbf16>
    %142 = vector.shape_cast %141 : vector<1x4x32xbf16> to vector<4x32xbf16>
    %143 = vector.shape_cast %138 : vector<1x32xbf16> to vector<1x32xbf16>
    %144 = vector.broadcast %143 : vector<1x32xbf16> to vector<4x32xbf16>
    %145 = arith.select %140, %144, %142 : vector<4x32xi1>, vector<4x32xbf16>
    %c0_67 = arith.constant 0 : index
    %c0_68 = arith.constant 0 : index
    %c0_69 = arith.constant 0 : index
    %146 = vector.load %arg16[%c0_67, %c0_68, %c0_69] : memref<1x4x32xbf16, #tpu.memory_space<vmem>>, vector<1x4x32xbf16>
    %147 = vector.shape_cast %146 : vector<1x4x32xbf16> to vector<4x32xbf16>
    %148 = vector.shape_cast %145 : vector<4x32xbf16> to vector<1x4x32xbf16>
    tpu.vector_store %arg16[%c0_67, %c0_68, %c0_69], %148 {strides = array<i32>} : memref<1x4x32xbf16, #tpu.memory_space<vmem>>, vector<1x4x32xbf16>,
    return
  }
  func.func @transform_0(%arg0: i32, %arg1: i32) -> (i32, i32, i32) {
    %c0_i32 = arith.constant 0 : i32
    %c0_i32_0 = arith.constant 0 : i32
    %c0_i32_1 = arith.constant 0 : i32
    return %arg0, %c0_i32, %c0_i32_0 : i32, i32, i32
  }
  func.func @transform_1(%arg0: i32, %arg1: i32) -> (i32, i32, i32) {
    %c0_i32 = arith.constant 0 : i32
    %c0_i32_0 = arith.constant 0 : i32
    %c0_i32_1 = arith.constant 0 : i32
    return %arg0, %c0_i32, %c0_i32_0 : i32, i32, i32
  }
  func.func @transform_2(%arg0: i32, %arg1: i32) -> (i32, i32, i32) {
    %c0_i32 = arith.constant 0 : i32
    %c0_i32_0 = arith.constant 0 : i32
    %c0_i32_1 = arith.constant 0 : i32
    return %arg1, %c0_i32, %c0_i32_0 : i32, i32, i32
  }
  func.func @transform_3(%arg0: i32, %arg1: i32) -> (i32, i32, i32) {
    %c0_i32 = arith.constant 0 : i32
    %c0_i32_0 = arith.constant 0 : i32
    %c0_i32_1 = arith.constant 0 : i32
    return %arg1, %c0_i32, %c0_i32_0 : i32, i32, i32
  }
  func.func @transform_4(%arg0: i32, %arg1: i32) -> (i32, i32, i32) {
    %c0_i32 = arith.constant 0 : i32
    %c0_i32_0 = arith.constant 0 : i32
    %c0_i32_1 = arith.constant 0 : i32
    return %arg1, %c0_i32, %c0_i32_0 : i32, i32, i32
  }
  func.func @transform_5(%arg0: i32, %arg1: i32) -> (i32, i32, i32) {
    %c0_i32 = arith.constant 0 : i32
    %c0_i32_0 = arith.constant 0 : i32
    %c0_i32_1 = arith.constant 0 : i32
    return %arg1, %c0_i32, %c0_i32_0 : i32, i32, i32
  }
  func.func @transform_6(%arg0: i32, %arg1: i32) -> (i32, i32, i32) {
    %c0_i32 = arith.constant 0 : i32
    %c0_i32_0 = arith.constant 0 : i32
    %c0_i32_1 = arith.constant 0 : i32
    return %arg1, %c0_i32, %c0_i32_0 : i32, i32, i32
  }
  func.func @transform_7(%arg0: i32, %arg1: i32) -> (i32, i32, i32) {
    %c0_i32 = arith.constant 0 : i32
    %c0_i32_0 = arith.constant 0 : i32
    %c0_i32_1 = arith.constant 0 : i32
    return %arg1, %c0_i32, %c0_i32_0 : i32, i32, i32
  }
  func.func @transform_8(%arg0: i32, %arg1: i32) -> (i32, i32, i32) {
    %c0_i32 = arith.constant 0 : i32
    %c0_i32_0 = arith.constant 0 : i32
    %c0_i32_1 = arith.constant 0 : i32
    return %arg1, %c0_i32, %c0_i32_0 : i32, i32, i32
  }
  func.func @transform_9(%arg0: i32, %arg1: i32) -> (i32, i32, i32) {
    %c0_i32 = arith.constant 0 : i32
    %c0_i32_0 = arith.constant 0 : i32
    %c0_i32_1 = arith.constant 0 : i32
    return %arg1, %c0_i32, %c0_i32_0 : i32, i32, i32
  }
  func.func @transform_10(%arg0: i32, %arg1: i32) -> (i32, i32, i32) {
    %c0_i32 = arith.constant 0 : i32
    %c0_i32_0 = arith.constant 0 : i32
    %c0_i32_1 = arith.constant 0 : i32
    return %arg1, %c0_i32, %c0_i32_0 : i32, i32, i32
  }
  func.func @transform_11(%arg0: i32, %arg1: i32) -> (i32, i32, i32) {
    %c0_i32 = arith.constant 0 : i32
    %c0_i32_0 = arith.constant 0 : i32
    %c0_i32_1 = arith.constant 0 : i32
    return %arg1, %c0_i32, %c0_i32_0 : i32, i32, i32
  }
  func.func @transform_12(%arg0: i32, %arg1: i32) -> (i32, i32, i32) {
    %c0_i32 = arith.constant 0 : i32
    %c0_i32_0 = arith.constant 0 : i32
    %c0_i32_1 = arith.constant 0 : i32
    return %arg1, %c0_i32, %c0_i32_0 : i32, i32, i32
  }
  func.func @transform_13(%arg0: i32, %arg1: i32) -> (i32, i32, i32) {
    %c0_i32 = arith.constant 0 : i32
    %c0_i32_0 = arith.constant 0 : i32
    %c0_i32_1 = arith.constant 0 : i32
    return %arg1, %c0_i32, %c0_i32_0 : i32, i32, i32
  }
  func.func @transform_14(%arg0: i32, %arg1: i32) -> (i32, i32, i32) {
    %c0_i32 = arith.constant 0 : i32
    %c0_i32_0 = arith.constant 0 : i32
    %c0_i32_1 = arith.constant 0 : i32
    return %arg0, %c0_i32, %c0_i32_0 : i32, i32, i32
  }
}

</mosaic_0001>

<llo_original>
// kernel: tpu_custom_call.1
$region0: #{tpu_custom_call.1}
  #allocation0 [shape = 'u32[]', space=smem, size = 0x4, offset = 0x4, fixed_abs, tag = 'smem constant byte address 0x4 - core index']
  #allocation1 [shape = 'u32[72,128]{1,0:T(1,128)}', space=vmem, size = 0x9000, scoped, tag = 'internal scratch']
  #allocation2 [shape = 'f32[8,32]{1,0:T(8,128)}', space=vmem, size = 0x1000, scoped, tag = 'scratch operand']
  %s0 = inlined_call_operand.vmem [shape: bf16[2,8,32], index: 0, kind: input, shape index: {}]
  %s1 = inlined_call_operand.vmem [shape: f32[2,1,8], index: 1, kind: input, shape index: {}]
  %s2 = inlined_call_operand.vmem [shape: bf16[4,32,96], index: 2, kind: input, shape index: {}]
  %s3 = inlined_call_operand.vmem [shape: f32[4,1,96], index: 3, kind: input, shape index: {}]
  %s4 = inlined_call_operand.vmem [shape: bf16[4,32,32], index: 4, kind: input, shape index: {}]
  %s5 = inlined_call_operand.vmem [shape: f32[4,1,32], index: 5, kind: input, shape index: {}]
  %s6 = inlined_call_operand.vmem [shape: f32[4,1,32], index: 6, kind: input, shape index: {}]
  %s7 = inlined_call_operand.vmem [shape: f32[4,1,32], index: 7, kind: input, shape index: {}]
  %s8 = inlined_call_operand.vmem [shape: bf16[4,32,128], index: 8, kind: input, shape index: {}]
  %s9 = inlined_call_operand.vmem [shape: f32[4,1,128], index: 9, kind: input, shape index: {}]
  %s10 = inlined_call_operand.vmem [shape: bf16[4,128,32], index: 10, kind: input, shape index: {}]
  %s11 = inlined_call_operand.vmem [shape: f32[4,1,32], index: 11, kind: input, shape index: {}]
  %s12 = inlined_call_operand.vmem [shape: f32[4,1,32], index: 12, kind: input, shape index: {}]
  %s13 = inlined_call_operand.vmem [shape: f32[4,1,32], index: 13, kind: input, shape index: {}]
  %s14 = inlined_call_operand.hbm [shape: bf16[2,4,32], index: 14, kind: output, shape index: {}]
  %s15 = sld [smem:[#allocation0]]
  $region93: #{tpu_custom_call.1} parent=0
    _
  %s17 = ssub.s32 1, %s15
  %s18 = scalar_select 0, %s17, %s15
  $region1: #{tpu_custom_call.1} parent=0
    #allocation3 [shape = 'u8[2048]{0}', space=vmem, size = 0x800, scoped, tag = 'output window, operand 0']
    #allocation4 [shape = 's32[2]{0}', space=sflag, size = 0x8, scoped, tag = 'scoped memory for tpu_custom_call.1']
    %19 = vsyncpa [#allocation4], 0
    %s20 = scalar_lea.sflag [#allocation4], 1
    %21 = vsyncpa %s20, 0
    loop: start=0, step=1, limit=10
    $region2: #{tpu_custom_call.1} parent=1 // loop_pre_header
      _
    $region3: #{tpu_custom_call.1} parent=1 // loop_header
      %s23 = sphi 0, %s27
      %p24 = scmp.ge.s32.totalorder %s23, 10
      %s30 = sphi 0, %s42
      %s31 = sphi 0, %s38
      %s32 = sphi 0, %s30
      %s33 = sphi 0, %s31
      %s34 = sphi 0, %s32
      %s35 = sphi 0, %s33
      %s45 = sphi 0, %s47
      %s48 = sphi 0, %s45
      %s49 = sphi 0, %s48
      %s65 = sphi 0, %s49
      %s71 = sphi 0, %s73
      %s74 = sphi 0, %s71
      %s75 = sphi 0, %s74
      %s91 = sphi 0, %s75
      %s97 = sphi 0, %s99
      %s100 = sphi 0, %s97
      %s101 = sphi 0, %s100
      %s117 = sphi 0, %s101
      %s123 = sphi 0, %s125
      %s126 = sphi 0, %s123
      %s127 = sphi 0, %s126
      %s143 = sphi 0, %s127
      %s149 = sphi 0, %s151
      %s152 = sphi 0, %s149
      %s153 = sphi 0, %s152
      %s169 = sphi 0, %s153
      %s175 = sphi 0, %s177
      %s178 = sphi 0, %s175
      %s179 = sphi 0, %s178
      %s195 = sphi 0, %s179
      %s201 = sphi 0, %s203
      %s204 = sphi 0, %s201
      %s205 = sphi 0, %s204
      %s221 = sphi 0, %s205
      %s227 = sphi 0, %s229
      %s230 = sphi 0, %s227
      %s231 = sphi 0, %s230
      %s247 = sphi 0, %s231
      %s253 = sphi 0, %s255
      %s256 = sphi 0, %s253
      %s257 = sphi 0, %s256
      %s273 = sphi 0, %s257
      %s279 = sphi 0, %s281
      %s282 = sphi 0, %s279
      %s283 = sphi 0, %s282
      %s299 = sphi 0, %s283
      %s305 = sphi 0, %s307
      %s308 = sphi 0, %s305
      %s309 = sphi 0, %s308
      %s325 = sphi 0, %s309
      %s331 = sphi 0, %s333
      %s334 = sphi 0, %s331
      %s335 = sphi 0, %s334
      %s351 = sphi 0, %s335
      %s357 = sphi 0, %s359
      %s360 = sphi 0, %s357
      %s361 = sphi 0, %s360
      %s377 = sphi 0, %s361
      %s383 = sphi 0, %s385
      %s386 = sphi 0, %s383
      %s387 = sphi 0, %s386
      %s403 = sphi 0, %s387
      %s409 = sphi 0, %s411
      %s412 = sphi 0, %s409
      %s413 = sphi 0, %s412
      %s429 = sphi 0, %s413
    $region4: #{tpu_custom_call.1} parent=1 // loop_header_branch
      %26 = sbr.rel (%p24) target = $region8
    $region5: #{tpu_custom_call.1} parent=1 // loop_body
      %s28 = ssub.s32 %s23, 1
      %s29 = ssub.s32 %s23, 2
      %s36 = sadd.s32 1, %s31
      %p37 = scmp.ge.s32.totalorder %s36, 4
      %s38 = scalar_select %p37, 0, %s36
      %s39 = sadd.s32 1, %s30
      %s40 = scalar_select %p37, %s39, %s30
      %p41 = scmp.ge.s32.totalorder %s40, 2
      %s42 = scalar_select %p41, 0, %s40
      %s43 = ssub.s32 %s30, %s42
      %p44 = scmp.eq.s32.totalorder %s43, 0
      %s46 = sadd.s32 %s45, 1
      %s47 = scalar_select %p44, %s45, %s46
      %p50 = pneg %p44
      %p51 = scmp.eq.s32.totalorder %s23, 7
      %p52 = por %p50, %p51
      %p53 = scmp.ne.s32.totalorder %s45, %s48
      %p54 = scmp.eq.s32.totalorder %s23, 0
      %p55 = por %p53, %p54
      %p56 = scmp.ne.s32.totalorder %s45, %s48
      %p57 = scmp.eq.s32.totalorder %s28, 7
      %p58 = por %p56, %p57
      %p59 = scmp.ne.s32.totalorder %s48, %s49
      %p60 = scmp.eq.s32.totalorder %s28, 0
      %p61 = por %p59, %p60
      %p62 = scmp.ne.s32.totalorder %s48, %s49
      %p63 = scmp.eq.s32.totalorder %s29, 7
      %p64 = por %p62, %p63
      %p66 = scmp.ne.s32.totalorder %s49, %s65
      %p67 = scmp.eq.s32.totalorder %s29, 0
      %p68 = por %p66, %p67
      %s69 = ssub.s32 %s30, %s42
      %p70 = scmp.eq.s32.totalorder %s69, 0
      %s72 = sadd.s32 %s71, 1
      %s73 = scalar_select %p70, %s71, %s72
      %p76 = pneg %p70
      %p77 = scmp.eq.s32.totalorder %s23, 7
      %p78 = por %p76, %p77
      %p79 = scmp.ne.s32.totalorder %s71, %s74
      %p80 = scmp.eq.s32.totalorder %s23, 0
      %p81 = por %p79, %p80
      %p82 = scmp.ne.s32.totalorder %s71, %s74
      %p83 = scmp.eq.s32.totalorder %s28, 7
      %p84 = por %p82, %p83
      %p85 = scmp.ne.s32.totalorder %s74, %s75
      %p86 = scmp.eq.s32.totalorder %s28, 0
      %p87 = por %p85, %p86
      %p88 = scmp.ne.s32.totalorder %s74, %s75
      %p89 = scmp.eq.s32.totalorder %s29, 7
      %p90 = por %p88, %p89
      %p92 = scmp.ne.s32.totalorder %s75, %s91
      %p93 = scmp.eq.s32.totalorder %s29, 0
      %p94 = por %p92, %p93
      %s95 = ssub.s32 %s31, %s38
      %p96 = scmp.eq.s32.totalorder %s95, 0
      %s98 = sadd.s32 %s97, 1
      %s99 = scalar_select %p96, %s97, %s98
      %p102 = pneg %p96
      %p103 = scmp.eq.s32.totalorder %s23, 7
      %p104 = por %p102, %p103
      %p105 = scmp.ne.s32.totalorder %s97, %s100
      %p106 = scmp.eq.s32.totalorder %s23, 0
      %p107 = por %p105, %p106
      %p108 = scmp.ne.s32.totalorder %s97, %s100
      %p109 = scmp.eq.s32.totalorder %s28, 7
      %p110 = por %p108, %p109
      %p111 = scmp.ne.s32.totalorder %s100, %s101
      %p112 = scmp.eq.s32.totalorder %s28, 0
      %p113 = por %p111, %p112
      %p114 = scmp.ne.s32.totalorder %s100, %s101
      %p115 = scmp.eq.s32.totalorder %s29, 7
      %p116 = por %p114, %p115
      %p118 = scmp.ne.s32.totalorder %s101, %s117
      %p119 = scmp.eq.s32.totalorder %s29, 0
      %p120 = por %p118, %p119
      %s121 = ssub.s32 %s31, %s38
      %p122 = scmp.eq.s32.totalorder %s121, 0
      %s124 = sadd.s32 %s123, 1
      %s125 = scalar_select %p122, %s123, %s124
      %p128 = pneg %p122
      %p129 = scmp.eq.s32.totalorder %s23, 7
      %p130 = por %p128, %p129
      %p131 = scmp.ne.s32.totalorder %s123, %s126
      %p132 = scmp.eq.s32.totalorder %s23, 0
      %p133 = por %p131, %p132
      %p134 = scmp.ne.s32.totalorder %s123, %s126
      %p135 = scmp.eq.s32.totalorder %s28, 7
      %p136 = por %p134, %p135
      %p137 = scmp.ne.s32.totalorder %s126, %s127
      %p138 = scmp.eq.s32.totalorder %s28, 0
      %p139 = por %p137, %p138
      %p140 = scmp.ne.s32.totalorder %s126, %s127
      %p141 = scmp.eq.s32.totalorder %s29, 7
      %p142 = por %p140, %p141
      %p144 = scmp.ne.s32.totalorder %s127, %s143
      %p145 = scmp.eq.s32.totalorder %s29, 0
      %p146 = por %p144, %p145
      %s147 = ssub.s32 %s31, %s38
      %p148 = scmp.eq.s32.totalorder %s147, 0
      %s150 = sadd.s32 %s149, 1
      %s151 = scalar_select %p148, %s149, %s150
      %p154 = pneg %p148
      %p155 = scmp.eq.s32.totalorder %s23, 7
      %p156 = por %p154, %p155
      %p157 = scmp.ne.s32.totalorder %s149, %s152
      %p158 = scmp.eq.s32.totalorder %s23, 0
      %p159 = por %p157, %p158
      %p160 = scmp.ne.s32.totalorder %s149, %s152
      %p161 = scmp.eq.s32.totalorder %s28, 7
      %p162 = por %p160, %p161
      %p163 = scmp.ne.s32.totalorder %s152, %s153
      %p164 = scmp.eq.s32.totalorder %s28, 0
      %p165 = por %p163, %p164
      %p166 = scmp.ne.s32.totalorder %s152, %s153
      %p167 = scmp.eq.s32.totalorder %s29, 7
      %p168 = por %p166, %p167
      %p170 = scmp.ne.s32.totalorder %s153, %s169
      %p171 = scmp.eq.s32.totalorder %s29, 0
      %p172 = por %p170, %p171
      %s173 = ssub.s32 %s31, %s38
      %p174 = scmp.eq.s32.totalorder %s173, 0
      %s176 = sadd.s32 %s175, 1
      %s177 = scalar_select %p174, %s175, %s176
      %p180 = pneg %p174
      %p181 = scmp.eq.s32.totalorder %s23, 7
      %p182 = por %p180, %p181
      %p183 = scmp.ne.s32.totalorder %s175, %s178
      %p184 = scmp.eq.s32.totalorder %s23, 0
      %p185 = por %p183, %p184
      %p186 = scmp.ne.s32.totalorder %s175, %s178
      %p187 = scmp.eq.s32.totalorder %s28, 7
      %p188 = por %p186, %p187
      %p189 = scmp.ne.s32.totalorder %s178, %s179
      %p190 = scmp.eq.s32.totalorder %s28, 0
      %p191 = por %p189, %p190
      %p192 = scmp.ne.s32.totalorder %s178, %s179
      %p193 = scmp.eq.s32.totalorder %s29, 7
      %p194 = por %p192, %p193
      %p196 = scmp.ne.s32.totalorder %s179, %s195
      %p197 = scmp.eq.s32.totalorder %s29, 0
      %p198 = por %p196, %p197
      %s199 = ssub.s32 %s31, %s38
      %p200 = scmp.eq.s32.totalorder %s199, 0
      %s202 = sadd.s32 %s201, 1
      %s203 = scalar_select %p200, %s201, %s202
      %p206 = pneg %p200
      %p207 = scmp.eq.s32.totalorder %s23, 7
      %p208 = por %p206, %p207
      %p209 = scmp.ne.s32.totalorder %s201, %s204
      %p210 = scmp.eq.s32.totalorder %s23, 0
      %p211 = por %p209, %p210
      %p212 = scmp.ne.s32.totalorder %s201, %s204
      %p213 = scmp.eq.s32.totalorder %s28, 7
      %p214 = por %p212, %p213
      %p215 = scmp.ne.s32.totalorder %s204, %s205
      %p216 = scmp.eq.s32.totalorder %s28, 0
      %p217 = por %p215, %p216
      %p218 = scmp.ne.s32.totalorder %s204, %s205
      %p219 = scmp.eq.s32.totalorder %s29, 7
      %p220 = por %p218, %p219
      %p222 = scmp.ne.s32.totalorder %s205, %s221
      %p223 = scmp.eq.s32.totalorder %s29, 0
      %p224 = por %p222, %p223
      %s225 = ssub.s32 %s31, %s38
      %p226 = scmp.eq.s32.totalorder %s225, 0
      %s228 = sadd.s32 %s227, 1
      %s229 = scalar_select %p226, %s227, %s228
      %p232 = pneg %p226
      %p233 = scmp.eq.s32.totalorder %s23, 7
      %p234 = por %p232, %p233
      %p235 = scmp.ne.s32.totalorder %s227, %s230
      %p236 = scmp.eq.s32.totalorder %s23, 0
      %p237 = por %p235, %p236
      %p238 = scmp.ne.s32.totalorder %s227, %s230
      %p239 = scmp.eq.s32.totalorder %s28, 7
      %p240 = por %p238, %p239
      %p241 = scmp.ne.s32.totalorder %s230, %s231
      %p242 = scmp.eq.s32.totalorder %s28, 0
      %p243 = por %p241, %p242
      %p244 = scmp.ne.s32.totalorder %s230, %s231
      %p245 = scmp.eq.s32.totalorder %s29, 7
      %p246 = por %p244, %p245
      %p248 = scmp.ne.s32.totalorder %s231, %s247
      %p249 = scmp.eq.s32.totalorder %s29, 0
      %p250 = por %p248, %p249
      %s251 = ssub.s32 %s31, %s38
      %p252 = scmp.eq.s32.totalorder %s251, 0
      %s254 = sadd.s32 %s253, 1
      %s255 = scalar_select %p252, %s253, %s254
      %p258 = pneg %p252
      %p259 = scmp.eq.s32.totalorder %s23, 7
      %p260 = por %p258, %p259
      %p261 = scmp.ne.s32.totalorder %s253, %s256
      %p262 = scmp.eq.s32.totalorder %s23, 0
      %p263 = por %p261, %p262
      %p264 = scmp.ne.s32.totalorder %s253, %s256
      %p265 = scmp.eq.s32.totalorder %s28, 7
      %p266 = por %p264, %p265
      %p267 = scmp.ne.s32.totalorder %s256, %s257
      %p268 = scmp.eq.s32.totalorder %s28, 0
      %p269 = por %p267, %p268
      %p270 = scmp.ne.s32.totalorder %s256, %s257
      %p271 = scmp.eq.s32.totalorder %s29, 7
      %p272 = por %p270, %p271
      %p274 = scmp.ne.s32.totalorder %s257, %s273
      %p275 = scmp.eq.s32.totalorder %s29, 0
      %p276 = por %p274, %p275
      %s277 = ssub.s32 %s31, %s38
      %p278 = scmp.eq.s32.totalorder %s277, 0
      %s280 = sadd.s32 %s279, 1
      %s281 = scalar_select %p278, %s279, %s280
      %p284 = pneg %p278
      %p285 = scmp.eq.s32.totalorder %s23, 7
      %p286 = por %p284, %p285
      %p287 = scmp.ne.s32.totalorder %s279, %s282
      %p288 = scmp.eq.s32.totalorder %s23, 0
      %p289 = por %p287, %p288
      %p290 = scmp.ne.s32.totalorder %s279, %s282
      %p291 = scmp.eq.s32.totalorder %s28, 7
      %p292 = por %p290, %p291
      %p293 = scmp.ne.s32.totalorder %s282, %s283
      %p294 = scmp.eq.s32.totalorder %s28, 0
      %p295 = por %p293, %p294
      %p296 = scmp.ne.s32.totalorder %s282, %s283
      %p297 = scmp.eq.s32.totalorder %s29, 7
      %p298 = por %p296, %p297
      %p300 = scmp.ne.s32.totalorder %s283, %s299
      %p301 = scmp.eq.s32.totalorder %s29, 0
      %p302 = por %p300, %p301
      %s303 = ssub.s32 %s31, %s38
      %p304 = scmp.eq.s32.totalorder %s303, 0
      %s306 = sadd.s32 %s305, 1
      %s307 = scalar_select %p304, %s305, %s306
      %p310 = pneg %p304
      %p311 = scmp.eq.s32.totalorder %s23, 7
      %p312 = por %p310, %p311
      %p313 = scmp.ne.s32.totalorder %s305, %s308
      %p314 = scmp.eq.s32.totalorder %s23, 0
      %p315 = por %p313, %p314
      %p316 = scmp.ne.s32.totalorder %s305, %s308
      %p317 = scmp.eq.s32.totalorder %s28, 7
      %p318 = por %p316, %p317
      %p319 = scmp.ne.s32.totalorder %s308, %s309
      %p320 = scmp.eq.s32.totalorder %s28, 0
      %p321 = por %p319, %p320
      %p322 = scmp.ne.s32.totalorder %s308, %s309
      %p323 = scmp.eq.s32.totalorder %s29, 7
      %p324 = por %p322, %p323
      %p326 = scmp.ne.s32.totalorder %s309, %s325
      %p327 = scmp.eq.s32.totalorder %s29, 0
      %p328 = por %p326, %p327
      %s329 = ssub.s32 %s31, %s38
      %p330 = scmp.eq.s32.totalorder %s329, 0
      %s332 = sadd.s32 %s331, 1
      %s333 = scalar_select %p330, %s331, %s332
      %p336 = pneg %p330
      %p337 = scmp.eq.s32.totalorder %s23, 7
      %p338 = por %p336, %p337
      %p339 = scmp.ne.s32.totalorder %s331, %s334
      %p340 = scmp.eq.s32.totalorder %s23, 0
      %p341 = por %p339, %p340
      %p342 = scmp.ne.s32.totalorder %s331, %s334
      %p343 = scmp.eq.s32.totalorder %s28, 7
      %p344 = por %p342, %p343
      %p345 = scmp.ne.s32.totalorder %s334, %s335
      %p346 = scmp.eq.s32.totalorder %s28, 0
      %p347 = por %p345, %p346
      %p348 = scmp.ne.s32.totalorder %s334, %s335
      %p349 = scmp.eq.s32.totalorder %s29, 7
      %p350 = por %p348, %p349
      %p352 = scmp.ne.s32.totalorder %s335, %s351
      %p353 = scmp.eq.s32.totalorder %s29, 0
      %p354 = por %p352, %p353
      %s355 = ssub.s32 %s31, %s38
      %p356 = scmp.eq.s32.totalorder %s355, 0
      %s358 = sadd.s32 %s357, 1
      %s359 = scalar_select %p356, %s357, %s358
      %p362 = pneg %p356
      %p363 = scmp.eq.s32.totalorder %s23, 7
      %p364 = por %p362, %p363
      %p365 = scmp.ne.s32.totalorder %s357, %s360
      %p366 = scmp.eq.s32.totalorder %s23, 0
      %p367 = por %p365, %p366
      %p368 = scmp.ne.s32.totalorder %s357, %s360
      %p369 = scmp.eq.s32.totalorder %s28, 7
      %p370 = por %p368, %p369
      %p371 = scmp.ne.s32.totalorder %s360, %s361
      %p372 = scmp.eq.s32.totalorder %s28, 0
      %p373 = por %p371, %p372
      %p374 = scmp.ne.s32.totalorder %s360, %s361
      %p375 = scmp.eq.s32.totalorder %s29, 7
      %p376 = por %p374, %p375
      %p378 = scmp.ne.s32.totalorder %s361, %s377
      %p379 = scmp.eq.s32.totalorder %s29, 0
      %p380 = por %p378, %p379
      %s381 = ssub.s32 %s31, %s38
      %p382 = scmp.eq.s32.totalorder %s381, 0
      %s384 = sadd.s32 %s383, 1
      %s385 = scalar_select %p382, %s383, %s384
      %p388 = pneg %p382
      %p389 = scmp.eq.s32.totalorder %s23, 7
      %p390 = por %p388, %p389
      %p391 = scmp.ne.s32.totalorder %s383, %s386
      %p392 = scmp.eq.s32.totalorder %s23, 0
      %p393 = por %p391, %p392
      %p394 = scmp.ne.s32.totalorder %s383, %s386
      %p395 = scmp.eq.s32.totalorder %s28, 7
      %p396 = por %p394, %p395
      %p397 = scmp.ne.s32.totalorder %s386, %s387
      %p398 = scmp.eq.s32.totalorder %s28, 0
      %p399 = por %p397, %p398
      %p400 = scmp.ne.s32.totalorder %s386, %s387
      %p401 = scmp.eq.s32.totalorder %s29, 7
      %p402 = por %p400, %p401
      %p404 = scmp.ne.s32.totalorder %s387, %s403
      %p405 = scmp.eq.s32.totalorder %s29, 0
      %p406 = por %p404, %p405
      %s407 = ssub.s32 %s30, %s42
      %p408 = scmp.eq.s32.totalorder %s407, 0
      %s410 = sadd.s32 %s409, 1
      %s411 = scalar_select %p408, %s409, %s410
      %p414 = pneg %p408
      %p415 = scmp.eq.s32.totalorder %s23, 7
      %p416 = por %p414, %p415
      %p417 = scmp.ne.s32.totalorder %s409, %s412
      %p418 = scmp.eq.s32.totalorder %s23, 0
      %p419 = por %p417, %p418
      %p420 = scmp.ne.s32.totalorder %s409, %s412
      %p421 = scmp.eq.s32.totalorder %s28, 7
      %p422 = por %p420, %p421
      %p423 = scmp.ne.s32.totalorder %s412, %s413
      %p424 = scmp.eq.s32.totalorder %s28, 0
      %p425 = por %p423, %p424
      %p426 = scmp.ne.s32.totalorder %s412, %s413
      %p427 = scmp.eq.s32.totalorder %s29, 7
      %p428 = por %p426, %p427
      %p430 = scmp.ne.s32.totalorder %s413, %s429
      %p431 = scmp.eq.s32.totalorder %s29, 0
      %p432 = por %p430, %p431
      %p433 = scmp.le.s32.totalorder 1, %s23
      %p434 = scmp.lt.s32.totalorder %s23, 9
      %p435 = pnand %p433, %p434
      %p436 = pneg %p435
      // Predicated region
      $region9: #{tpu_custom_call.1} parent=5 // pred_check
        _
      $region10: #{tpu_custom_call.1} parent=5 // pred_check_branch
        %438 = sbr.rel (%p435) target = $region12
      $region11: #{tpu_custom_call.1} parent=5 // pred_region
        %s439 = ssub.s32 %s23, 1
      $region12: #{tpu_custom_call.1} parent=5 // pred_fallthru
        _
      %p440 = scmp.lt.s32.totalorder %s23, 8
      // Predicated region
      $region13: #{tpu_custom_call.1} parent=5 // pred_check
        %p441 = pneg %p440
      $region14: #{tpu_custom_call.1} parent=5 // pred_check_branch
        %443 = sbr.rel (%p441) target = $region16
      $region15: #{tpu_custom_call.1} parent=5 // pred_region
        // Predicated region
        $region17: #{tpu_custom_call.1} parent=15 // pred_check
          %p444 = pneg %p55
        $region18: #{tpu_custom_call.1} parent=15 // pred_check_branch
          %446 = sbr.rel (%p444) target = $region20
        $region19: #{tpu_custom_call.1} parent=15 // pred_region
          %p447 = scmp.lt.s32.totalorder %s30, 1
          %s448 = scalar_select %p447, %s30, 1
          %s449 = smul.addr %s448, 4
          %s450 = scalar_lea.vmem %s0, %s449
        $region20: #{tpu_custom_call.1} parent=15 // pred_fallthru
          _
        // Predicated region
        $region21: #{tpu_custom_call.1} parent=15 // pred_check
          %p451 = pneg %p81
        $region22: #{tpu_custom_call.1} parent=15 // pred_check_branch
          %453 = sbr.rel (%p451) target = $region24
        $region23: #{tpu_custom_call.1} parent=15 // pred_region
          %p454 = scmp.lt.s32.totalorder %s30, 1
          %s455 = scalar_select %p454, %s30, 1
          %s456 = scalar_lea.vmem %s1, %s455
        $region24: #{tpu_custom_call.1} parent=15 // pred_fallthru
          _
        // Predicated region
        $region25: #{tpu_custom_call.1} parent=15 // pred_check
          %p457 = pneg %p107
        $region26: #{tpu_custom_call.1} parent=15 // pred_check_branch
          %459 = sbr.rel (%p457) target = $region28
        $region27: #{tpu_custom_call.1} parent=15 // pred_region
          %p460 = scmp.lt.s32.totalorder %s31, 3
          %s461 = scalar_select %p460, %s31, 3
          %s462 = smul.addr %s461, 4
          %s463 = smul.addr %s462, 4
          %s464 = scalar_lea.vmem %s2, %s463
        $region28: #{tpu_custom_call.1} parent=15 // pred_fallthru
          _
        // Predicated region
        $region29: #{tpu_custom_call.1} parent=15 // pred_check
          %p465 = pneg %p133
        $region30: #{tpu_custom_call.1} parent=15 // pred_check_branch
          %467 = sbr.rel (%p465) target = $region32
        $region31: #{tpu_custom_call.1} parent=15 // pred_region
          %p468 = scmp.lt.s32.totalorder %s31, 3
          %s469 = scalar_select %p468, %s31, 3
          %s470 = scalar_lea.vmem %s3, %s469
        $region32: #{tpu_custom_call.1} parent=15 // pred_fallthru
          _
        // Predicated region
        $region33: #{tpu_custom_call.1} parent=15 // pred_check
          %p471 = pneg %p159
        $region34: #{tpu_custom_call.1} parent=15 // pred_check_branch
          %473 = sbr.rel (%p471) target = $region36
        $region35: #{tpu_custom_call.1} parent=15 // pred_region
          %p474 = scmp.lt.s32.totalorder %s31, 3
          %s475 = scalar_select %p474, %s31, 3
          %s476 = smul.addr %s475, 4
          %s477 = smul.addr %s476, 4
          %s478 = scalar_lea.vmem %s4, %s477
        $region36: #{tpu_custom_call.1} parent=15 // pred_fallthru
          _
        // Predicated region
        $region37: #{tpu_custom_call.1} parent=15 // pred_check
          %p479 = pneg %p185
        $region38: #{tpu_custom_call.1} parent=15 // pred_check_branch
          %481 = sbr.rel (%p479) target = $region40
        $region39: #{tpu_custom_call.1} parent=15 // pred_region
          %p482 = scmp.lt.s32.totalorder %s31, 3
          %s483 = scalar_select %p482, %s31, 3
          %s484 = scalar_lea.vmem %s5, %s483
        $region40: #{tpu_custom_call.1} parent=15 // pred_fallthru
          _
        // Predicated region
        $region41: #{tpu_custom_call.1} parent=15 // pred_check
          %p485 = pneg %p211
        $region42: #{tpu_custom_call.1} parent=15 // pred_check_branch
          %487 = sbr.rel (%p485) target = $region44
        $region43: #{tpu_custom_call.1} parent=15 // pred_region
          %p488 = scmp.lt.s32.totalorder %s31, 3
          %s489 = scalar_select %p488, %s31, 3
          %s490 = scalar_lea.vmem %s6, %s489
        $region44: #{tpu_custom_call.1} parent=15 // pred_fallthru
          _
        // Predicated region
        $region45: #{tpu_custom_call.1} parent=15 // pred_check
          %p491 = pneg %p237
        $region46: #{tpu_custom_call.1} parent=15 // pred_check_branch
          %493 = sbr.rel (%p491) target = $region48
        $region47: #{tpu_custom_call.1} parent=15 // pred_region
          %p494 = scmp.lt.s32.totalorder %s31, 3
          %s495 = scalar_select %p494, %s31, 3
          %s496 = scalar_lea.vmem %s7, %s495
        $region48: #{tpu_custom_call.1} parent=15 // pred_fallthru
          _
        // Predicated region
        $region49: #{tpu_custom_call.1} parent=15 // pred_check
          %p497 = pneg %p263
        $region50: #{tpu_custom_call.1} parent=15 // pred_check_branch
          %499 = sbr.rel (%p497) target = $region52
        $region51: #{tpu_custom_call.1} parent=15 // pred_region
          %p500 = scmp.lt.s32.totalorder %s31, 3
          %s501 = scalar_select %p500, %s31, 3
          %s502 = smul.addr %s501, 4
          %s503 = smul.addr %s502, 4
          %s504 = scalar_lea.vmem %s8, %s503
        $region52: #{tpu_custom_call.1} parent=15 // pred_fallthru
          _
        // Predicated region
        $region53: #{tpu_custom_call.1} parent=15 // pred_check
          %p505 = pneg %p289
        $region54: #{tpu_custom_call.1} parent=15 // pred_check_branch
          %507 = sbr.rel (%p505) target = $region56
        $region55: #{tpu_custom_call.1} parent=15 // pred_region
          %p508 = scmp.lt.s32.totalorder %s31, 3
          %s509 = scalar_select %p508, %s31, 3
          %s510 = scalar_lea.vmem %s9, %s509
        $region56: #{tpu_custom_call.1} parent=15 // pred_fallthru
          _
        // Predicated region
        $region57: #{tpu_custom_call.1} parent=15 // pred_check
          %p511 = pneg %p315
        $region58: #{tpu_custom_call.1} parent=15 // pred_check_branch
          %513 = sbr.rel (%p511) target = $region60
        $region59: #{tpu_custom_call.1} parent=15 // pred_region
          %p514 = scmp.lt.s32.totalorder %s31, 3
          %s515 = scalar_select %p514, %s31, 3
          %s516 = smul.addr %s515, 16
          %s517 = smul.addr %s516, 4
          %s518 = scalar_lea.vmem %s10, %s517
        $region60: #{tpu_custom_call.1} parent=15 // pred_fallthru
          _
        // Predicated region
        $region61: #{tpu_custom_call.1} parent=15 // pred_check
          %p519 = pneg %p341
        $region62: #{tpu_custom_call.1} parent=15 // pred_check_branch
          %521 = sbr.rel (%p519) target = $region64
        $region63: #{tpu_custom_call.1} parent=15 // pred_region
          %p522 = scmp.lt.s32.totalorder %s31, 3
          %s523 = scalar_select %p522, %s31, 3
          %s524 = scalar_lea.vmem %s11, %s523
        $region64: #{tpu_custom_call.1} parent=15 // pred_fallthru
          _
        // Predicated region
        $region65: #{tpu_custom_call.1} parent=15 // pred_check
          %p525 = pneg %p367
        $region66: #{tpu_custom_call.1} parent=15 // pred_check_branch
          %527 = sbr.rel (%p525) target = $region68
        $region67: #{tpu_custom_call.1} parent=15 // pred_region
          %p528 = scmp.lt.s32.totalorder %s31, 3
          %s529 = scalar_select %p528, %s31, 3
          %s530 = scalar_lea.vmem %s12, %s529
        $region68: #{tpu_custom_call.1} parent=15 // pred_fallthru
          _
        // Predicated region
        $region69: #{tpu_custom_call.1} parent=15 // pred_check
          %p531 = pneg %p393
        $region70: #{tpu_custom_call.1} parent=15 // pred_check_branch
          %533 = sbr.rel (%p531) target = $region72
        $region71: #{tpu_custom_call.1} parent=15 // pred_region
          %p534 = scmp.lt.s32.totalorder %s31, 3
          %s535 = scalar_select %p534, %s31, 3
          %s536 = scalar_lea.vmem %s13, %s535
        $region72: #{tpu_custom_call.1} parent=15 // pred_fallthru
          _
      $region16: #{tpu_custom_call.1} parent=5 // pred_fallthru
        _
      %p537 = scmp.le.s32.totalorder 1, %s23
      %p538 = scmp.lt.s32.totalorder %s23, 9
      %p539 = pnand %p537, %p538
      %p540 = pneg %p539
      // Predicated region
      $region73: #{tpu_custom_call.1} parent=5 // pred_check
        _
      $region74: #{tpu_custom_call.1} parent=5 // pred_check_branch
        %542 = sbr.rel (%p539) target = $region76
      $region75: #{tpu_custom_call.1} parent=5 // pred_region
        %s543 = ssub.s32 %s23, 1
        %p544 = scmp.lt.s32.totalorder %s32, 1
        %s545 = scalar_select %p544, %s32, 1
        %s546 = smul.addr %s545, 4
        %s547 = scalar_lea.vmem %s0, %s546
        %p548 = pneg %p61
        %p549 = pneg %p58
        %p550 = scmp.lt.s32.totalorder %s32, 1
        %s551 = scalar_select %p550, %s32, 1
        %s552 = scalar_lea.vmem %s1, %s551
        %p553 = pneg %p87
        %p554 = pneg %p84
        %p555 = scmp.lt.s32.totalorder %s33, 3
        %s556 = scalar_select %p555, %s33, 3
        %s557 = smul.addr %s556, 4
        %s558 = smul.addr %s557, 4
        %s559 = scalar_lea.vmem %s2, %s558
        %p560 = pneg %p113
        %p561 = pneg %p110
        %p562 = scmp.lt.s32.totalorder %s33, 3
        %s563 = scalar_select %p562, %s33, 3
        %s564 = scalar_lea.vmem %s3, %s563
        %p565 = pneg %p139
        %p566 = pneg %p136
        %p567 = scmp.lt.s32.totalorder %s33, 3
        %s568 = scalar_select %p567, %s33, 3
        %s569 = smul.addr %s568, 4
        %s570 = smul.addr %s569, 4
        %s571 = scalar_lea.vmem %s4, %s570
        %p572 = pneg %p165
        %p573 = pneg %p162
        %p574 = scmp.lt.s32.totalorder %s33, 3
        %s575 = scalar_select %p574, %s33, 3
        %s576 = scalar_lea.vmem %s5, %s575
        %p577 = pneg %p191
        %p578 = pneg %p188
        %p579 = scmp.lt.s32.totalorder %s33, 3
        %s580 = scalar_select %p579, %s33, 3
        %s581 = scalar_lea.vmem %s6, %s580
        %p582 = pneg %p217
        %p583 = pneg %p214
        %p584 = scmp.lt.s32.totalorder %s33, 3
        %s585 = scalar_select %p584, %s33, 3
        %s586 = scalar_lea.vmem %s7, %s585
        %p587 = pneg %p243
        %p588 = pneg %p240
        %p589 = scmp.lt.s32.totalorder %s33, 3
        %s590 = scalar_select %p589, %s33, 3
        %s591 = smul.addr %s590, 4
        %s592 = smul.addr %s591, 4
        %s593 = scalar_lea.vmem %s8, %s592
        %p594 = pneg %p269
        %p595 = pneg %p266
        %p596 = scmp.lt.s32.totalorder %s33, 3
        %s597 = scalar_select %p596, %s33, 3
        %s598 = scalar_lea.vmem %s9, %s597
        %p599 = pneg %p295
        %p600 = pneg %p292
        %p601 = scmp.lt.s32.totalorder %s33, 3
        %s602 = scalar_select %p601, %s33, 3
        %s603 = smul.addr %s602, 16
        %s604 = smul.addr %s603, 4
        %s605 = scalar_lea.vmem %s10, %s604
        %p606 = pneg %p321
        %p607 = pneg %p318
        %p608 = scmp.lt.s32.totalorder %s33, 3
        %s609 = scalar_select %p608, %s33, 3
        %s610 = scalar_lea.vmem %s11, %s609
        %p611 = pneg %p347
        %p612 = pneg %p344
        %p613 = scmp.lt.s32.totalorder %s33, 3
        %s614 = scalar_select %p613, %s33, 3
        %s615 = scalar_lea.vmem %s12, %s614
        %p616 = pneg %p373
        %p617 = pneg %p370
        %p618 = scmp.lt.s32.totalorder %s33, 3
        %s619 = scalar_select %p618, %s33, 3
        %s620 = scalar_lea.vmem %s13, %s619
        %p621 = pneg %p399
        %p622 = pneg %p396
        %p623 = pneg %p425
        %p624 = pneg %p422
        %s625 = sand.u32 %s412, 1
        %s626 = scalar_lea.sflag [#allocation4], %s625
        %s627 = sand.u32 %s412, 1
        %s628 = smul.addr %s627, 2
        %s629 = scalar_lea.vmem [#allocation3], %s628
        %p630 = scmp.lt.s32.totalorder %s32, 1
        %s631 = scalar_select %p630, %s32, 1
        %s632 = smul.addr %s631, 4
        %s633 = scalar_lea.vmem %s0, %s632
        %p634 = scmp.lt.s32.totalorder %s32, 1
        %s635 = scalar_select %p634, %s32, 1
        %s636 = scalar_lea.vmem %s1, %s635
        %p637 = scmp.lt.s32.totalorder %s33, 3
        %s638 = scalar_select %p637, %s33, 3
        %s639 = smul.addr %s638, 4
        %s640 = smul.addr %s639, 4
        %s641 = scalar_lea.vmem %s2, %s640
        %p642 = scmp.lt.s32.totalorder %s33, 3
        %s643 = scalar_select %p642, %s33, 3
        %s644 = scalar_lea.vmem %s3, %s643
        %p645 = scmp.lt.s32.totalorder %s33, 3
        %s646 = scalar_select %p645, %s33, 3
        %s647 = smul.addr %s646, 4
        %s648 = smul.addr %s647, 4
        %s649 = scalar_lea.vmem %s4, %s648
        %p650 = scmp.lt.s32.totalorder %s33, 3
        %s651 = scalar_select %p650, %s33, 3
        %s652 = scalar_lea.vmem %s5, %s651
        %p653 = scmp.lt.s32.totalorder %s33, 3
        %s654 = scalar_select %p653, %s33, 3
        %s655 = scalar_lea.vmem %s6, %s654
        %p656 = scmp.lt.s32.totalorder %s33, 3
        %s657 = scalar_select %p656, %s33, 3
        %s658 = scalar_lea.vmem %s7, %s657
        %p659 = scmp.lt.s32.totalorder %s33, 3
        %s660 = scalar_select %p659, %s33, 3
        %s661 = smul.addr %s660, 4
        %s662 = smul.addr %s661, 4
        %s663 = scalar_lea.vmem %s8, %s662
        %p664 = scmp.lt.s32.totalorder %s33, 3
        %s665 = scalar_select %p664, %s33, 3
        %s666 = scalar_lea.vmem %s9, %s665
        %p667 = scmp.lt.s32.totalorder %s33, 3
        %s668 = scalar_select %p667, %s33, 3
        %s669 = smul.addr %s668, 16
        %s670 = smul.addr %s669, 4
        %s671 = scalar_lea.vmem %s10, %s670
        %p672 = scmp.lt.s32.totalorder %s33, 3
        %s673 = scalar_select %p672, %s33, 3
        %s674 = scalar_lea.vmem %s11, %s673
        %p675 = scmp.lt.s32.totalorder %s33, 3
        %s676 = scalar_select %p675, %s33, 3
        %s677 = scalar_lea.vmem %s12, %s676
        %p678 = scmp.lt.s32.totalorder %s33, 3
        %s679 = scalar_select %p678, %s33, 3
        %s680 = scalar_lea.vmem %s13, %s679
        %p682 = scmp.eq.s32.totalorder %s33, 0
        // Predicated region
        $region77: #{tpu_custom_call.1} parent=75 // pred_check
          %p683 = pneg %p682
        $region78: #{tpu_custom_call.1} parent=75 // pred_check_branch
          %685 = sbr.rel (%p683) target = $region80
        $region79: #{tpu_custom_call.1} parent=75 // pred_region
          %v686 = vld [vmem:[%s633] sm:$0xf]
          %v687 = vunpack.c.l.bf16 %v686
          %vm688 = vcmask 261120
          %689 = vst.msk [vmem:[#allocation2] sm:$0xff] %vm688, %v687
        $region80: #{tpu_custom_call.1} parent=75 // pred_fallthru
          _
        %v690 = vld [vmem:[#allocation2] sm:$0xff]
        %v691 = vpack.c.bf16 %v690, %v690
        %v692 = vld [vmem:[%s636] sm:$0x1]
        %v693 = vld [vmem:[%s641] sm:$0xf]
        %v694 = vld [vmem:[%s641 + $0x4] sm:$0xf]
        %v695 = vld [vmem:[%s641 + $0x8] sm:$0xf]
        %v696 = vld [vmem:[%s641 + $0xc] sm:$0xf]
        %v697 = vld [vmem:[%s644] sm:$0x1]
        %v699 = vperm.slane %v697, 0
        %v705 = vunpack.c.l.b16 %v693
        %v706 = vunpack.c.l.b16 %v694
        %v707 = vunpack.c.l.b16 %v695
        %v708 = vunpack.c.l.b16 %v696
        %v709 = vpack.c.b16 %v706, %v705
        %v710 = vpack.c.b16 %v708, %v707
        %vm713 = vcmask 261120
        %v715 = vsel %vm713, %v691, 0
        %717 = vmatpush.bf16.msra.mxu0 0
        %718 = vmatpush.bf16.msra.mxu0 0
        %719 = vmatpush.bf16.msra.mxu0 0
        %720 = vmatpush.bf16.msra.mxu0 0
        %721 = vmatpush.bf16.msra.mxu0 0
        %722 = vmatpush.bf16.msra.mxu0 0
        %723 = vmatpush.bf16.msra.mxu0 %v710
        %724 = vmatpush.bf16.msra.mxu0 %v709
        %725 = vmatmul.bf16.gmra.mxu0 %v715
        %v726 = vpop.f32.mrf.mxu0
        %v727 = vadd.f32 %v699, %v726
        %v728 = vpop.f32.mrf.mxu0
        %729 = vdwg.mxu0
        %731 = vrot.lane.b32.xlu0 %v727, 120
        %v732 = vpop.permute.xlu0 %731
        %734 = vrot.lane.b32.xlu0 %v727, 112
        %v735 = vpop.permute.xlu0 %734
        %737 = vrot.lane.b32.xlu0 %v727, 104
        %v738 = vpop.permute.xlu0 %737
        %v740 = vrot.slane %v735, 4
        %vm741 = vcmask 1047556
        %v742 = vsel %vm741, %v740, %v727
        %v743 = vrot.slane %v727, 4
        %v744 = vsel %vm741, %v735, %v743
        %v746 = vunpack.c.l.s4 1983009808
        %v747 = vunpack.c.0.s8 %v746
        %v748 = vperm.slane %v742, %v747
        %v750 = vunpack.c.l.s4 1983009808
        %v751 = vunpack.c.0.s8 %v750
        %v752 = vperm.slane %v744, %v751
        %v753 = vrot.slane %v738, 4
        %v754 = vsel %vm741, %v753, %v732
        %v755 = vrot.slane %v732, 4
        %v756 = vsel %vm741, %v738, %v755
        %v758 = vunpack.c.l.s4 1983009808
        %v759 = vunpack.c.0.s8 %v758
        %v760 = vperm.slane %v754, %v759
        %v762 = vunpack.c.l.s4 1983009808
        %v763 = vunpack.c.0.s8 %v762
        %v764 = vperm.slane %v756, %v763
        %v765 = vrot.slane %v760, 4
        %v766 = vsel %vm741, %v765, %v748
        %v767 = vrot.slane %v748, 4
        %v768 = vsel %vm741, %v760, %v767
        %v770 = vunpack.c.l.s4 1934713408
        %v771 = vunpack.c.0.s8 %v770
        %v772 = vperm.slane %v766, %v771
        %v774 = vunpack.c.l.s4 1934713408
        %v775 = vunpack.c.0.s8 %v774
        %v776 = vperm.slane %v768, %v775
        %v777 = vrot.slane %v764, 4
        %v778 = vsel %vm741, %v777, %v752
        %v779 = vrot.slane %v752, 4
        %v780 = vsel %vm741, %v764, %v779
        %v782 = vunpack.c.l.s4 1934713408
        %v783 = vunpack.c.0.s8 %v782
        %v784 = vperm.slane %v778, %v783
        %v786 = vunpack.c.l.s4 1934713408
        %v787 = vunpack.c.0.s8 %v786
        %v788 = vperm.slane %v780, %v787
        %v789 = vrot.slane %v772, 4
        %v790 = vsel %vm741, 0.0, %v789
        %v791 = vrot.slane %v776, 4
        %v792 = vsel %vm741, 0.0, %v791
        %v793 = vrot.slane %v784, 4
        %v794 = vsel %vm741, 0.0, %v793
        %v795 = vrot.slane %v788, 4
        %v796 = vsel %vm741, 0.0, %v795
        %v797 = vsel %vm741, %v791, %v772
        %v799 = vunpack.c.l.s4 1983009808
        %v800 = vunpack.c.0.s8 %v799
        %v801 = vperm.slane %v797, %v800
        %v802 = vrot.slane %v792, 4
        %v803 = vsel %vm741, %v802, %v790
        %v805 = vunpack.c.l.s4 1983009808
        %v806 = vunpack.c.0.s8 %v805
        %v807 = vperm.slane %v803, %v806
        %v808 = vsel %vm741, %v795, %v784
        %v810 = vunpack.c.l.s4 1983009808
        %v811 = vunpack.c.0.s8 %v810
        %v812 = vperm.slane %v808, %v811
        %v813 = vrot.slane %v796, 4
        %v814 = vsel %vm741, %v813, %v794
        %v816 = vunpack.c.l.s4 1983009808
        %v817 = vunpack.c.0.s8 %v816
        %v818 = vperm.slane %v814, %v817
        %v819 = vrot.slane %v807, 4
        %v820 = vsel %vm741, %v819, %v801
        %v821 = vrot.slane %v801, 4
        %v822 = vsel %vm741, %v807, %v821
        %v824 = vunpack.c.l.s4 1934713408
        %v825 = vunpack.c.0.s8 %v824
        %v826 = vperm.slane %v820, %v825
        %v828 = vunpack.c.l.s4 1934713408
        %v829 = vunpack.c.0.s8 %v828
        %v830 = vperm.slane %v822, %v829
        %v831 = vrot.slane %v818, 4
        %v832 = vsel %vm741, %v831, %v812
        %v833 = vrot.slane %v812, 4
        %v834 = vsel %vm741, %v818, %v833
        %v836 = vunpack.c.l.s4 1934713408
        %v837 = vunpack.c.0.s8 %v836
        %v838 = vperm.slane %v832, %v837
        %v840 = vunpack.c.l.s4 1934713408
        %v841 = vunpack.c.0.s8 %v840
        %v842 = vperm.slane %v834, %v841
        %v843 = vrot.slane %v838, 4
        %v844 = vsel %vm741, %v843, %v826
        %v845 = vrot.slane %v826, 4
        %v846 = vsel %vm741, %v838, %v845
        %v847 = vrot.slane %v842, 4
        %v848 = vsel %vm741, %v847, %v830
        %v849 = vrot.slane %v830, 4
        %v850 = vsel %vm741, %v842, %v849
        %v851 = vpack.c.bf16 %v844, %v844
        %v852 = vpack.c.bf16 %v846, %v846
        %v853 = vpack.c.bf16 %v848, %v848
        %v854 = vpack.c.bf16 %v850, %v850
        %855 = vrot.lane.b32.xlu0 %v727, 96
        %v856 = vpop.permute.xlu0 %855
        %857 = vrot.lane.b32.xlu0 %v732, 96
        %v858 = vpop.permute.xlu0 %857
        %859 = vrot.lane.b32.xlu0 %v735, 96
        %v860 = vpop.permute.xlu0 %859
        %861 = vrot.lane.b32.xlu0 %v738, 96
        %v862 = vpop.permute.xlu0 %861
        %v867 = vrot.slane %v860, 4
        %v868 = vsel %vm741, %v867, %v856
        %v869 = vrot.slane %v856, 4
        %v870 = vsel %vm741, %v860, %v869
        %v872 = vunpack.c.l.s4 1983009808
        %v873 = vunpack.c.0.s8 %v872
        %v874 = vperm.slane %v868, %v873
        %v876 = vunpack.c.l.s4 1983009808
        %v877 = vunpack.c.0.s8 %v876
        %v878 = vperm.slane %v870, %v877
        %v879 = vrot.slane %v862, 4
        %v880 = vsel %vm741, %v879, %v858
        %v881 = vrot.slane %v858, 4
        %v882 = vsel %vm741, %v862, %v881
        %v884 = vunpack.c.l.s4 1983009808
        %v885 = vunpack.c.0.s8 %v884
        %v886 = vperm.slane %v880, %v885
        %v888 = vunpack.c.l.s4 1983009808
        %v889 = vunpack.c.0.s8 %v888
        %v890 = vperm.slane %v882, %v889
        %v891 = vrot.slane %v886, 4
        %v892 = vsel %vm741, %v891, %v874
        %v893 = vrot.slane %v874, 4
        %v894 = vsel %vm741, %v886, %v893
        %v896 = vunpack.c.l.s4 1934713408
        %v897 = vunpack.c.0.s8 %v896
        %v898 = vperm.slane %v892, %v897
        %v900 = vunpack.c.l.s4 1934713408
        %v901 = vunpack.c.0.s8 %v900
        %v902 = vperm.slane %v894, %v901
        %v903 = vrot.slane %v890, 4
        %v904 = vsel %vm741, %v903, %v878
        %v905 = vrot.slane %v878, 4
        %v906 = vsel %vm741, %v890, %v905
        %v908 = vunpack.c.l.s4 1934713408
        %v909 = vunpack.c.0.s8 %v908
        %v910 = vperm.slane %v904, %v909
        %v912 = vunpack.c.l.s4 1934713408
        %v913 = vunpack.c.0.s8 %v912
        %v914 = vperm.slane %v906, %v913
        %v915 = vrot.slane %v898, 4
        %v916 = vsel %vm741, 0.0, %v915
        %v917 = vrot.slane %v902, 4
        %v918 = vsel %vm741, 0.0, %v917
        %v919 = vrot.slane %v910, 4
        %v920 = vsel %vm741, 0.0, %v919
        %v921 = vrot.slane %v914, 4
        %v922 = vsel %vm741, 0.0, %v921
        %v923 = vsel %vm741, %v917, %v898
        %v925 = vunpack.c.l.s4 1983009808
        %v926 = vunpack.c.0.s8 %v925
        %v927 = vperm.slane %v923, %v926
        %v928 = vrot.slane %v918, 4
        %v929 = vsel %vm741, %v928, %v916
        %v931 = vunpack.c.l.s4 1983009808
        %v932 = vunpack.c.0.s8 %v931
        %v933 = vperm.slane %v929, %v932
        %v934 = vsel %vm741, %v921, %v910
        %v936 = vunpack.c.l.s4 1983009808
        %v937 = vunpack.c.0.s8 %v936
        %v938 = vperm.slane %v934, %v937
        %v939 = vrot.slane %v922, 4
        %v940 = vsel %vm741, %v939, %v920
        %v942 = vunpack.c.l.s4 1983009808
        %v943 = vunpack.c.0.s8 %v942
        %v944 = vperm.slane %v940, %v943
        %v945 = vrot.slane %v933, 4
        %v946 = vsel %vm741, %v945, %v927
        %v947 = vrot.slane %v927, 4
        %v948 = vsel %vm741, %v933, %v947
        %v950 = vunpack.c.l.s4 1934713408
        %v951 = vunpack.c.0.s8 %v950
        %v952 = vperm.slane %v946, %v951
        %v954 = vunpack.c.l.s4 1934713408
        %v955 = vunpack.c.0.s8 %v954
        %v956 = vperm.slane %v948, %v955
        %v957 = vrot.slane %v944, 4
        %v958 = vsel %vm741, %v957, %v938
        %v959 = vrot.slane %v938, 4
        %v960 = vsel %vm741, %v944, %v959
        %v962 = vunpack.c.l.s4 1934713408
        %v963 = vunpack.c.0.s8 %v962
        %v964 = vperm.slane %v958, %v963
        %v966 = vunpack.c.l.s4 1934713408
        %v967 = vunpack.c.0.s8 %v966
        %v968 = vperm.slane %v960, %v967
        %v969 = vrot.slane %v964, 4
        %v970 = vsel %vm741, %v969, %v952
        %v971 = vrot.slane %v952, 4
        %v972 = vsel %vm741, %v964, %v971
        %v973 = vrot.slane %v968, 4
        %v974 = vsel %vm741, %v973, %v956
        %v975 = vrot.slane %v956, 4
        %v976 = vsel %vm741, %v968, %v975
        %v977 = vpack.c.bf16 %v970, %v970
        %v978 = vpack.c.bf16 %v972, %v972
        %v979 = vpack.c.bf16 %v974, %v974
        %v980 = vpack.c.bf16 %v976, %v976
        %981 = vrot.lane.b32.xlu0 %v727, 64
        %v982 = vpop.permute.xlu0 %981
        %983 = vrot.lane.b32.xlu0 %v732, 64
        %v984 = vpop.permute.xlu0 %983
        %985 = vrot.lane.b32.xlu0 %v735, 64
        %v986 = vpop.permute.xlu0 %985
        %987 = vrot.lane.b32.xlu0 %v738, 64
        %v988 = vpop.permute.xlu0 %987
        %v993 = vrot.slane %v986, 4
        %v994 = vsel %vm741, %v993, %v982
        %v995 = vrot.slane %v982, 4
        %v996 = vsel %vm741, %v986, %v995
        %v998 = vunpack.c.l.s4 1983009808
        %v999 = vunpack.c.0.s8 %v998
        %v1000 = vperm.slane %v994, %v999
        %v1002 = vunpack.c.l.s4 1983009808
        %v1003 = vunpack.c.0.s8 %v1002
        %v1004 = vperm.slane %v996, %v1003
        %v1005 = vrot.slane %v988, 4
        %v1006 = vsel %vm741, %v1005, %v984
        %v1007 = vrot.slane %v984, 4
        %v1008 = vsel %vm741, %v988, %v1007
        %v1010 = vunpack.c.l.s4 1983009808
        %v1011 = vunpack.c.0.s8 %v1010
        %v1012 = vperm.slane %v1006, %v1011
        %v1014 = vunpack.c.l.s4 1983009808
        %v1015 = vunpack.c.0.s8 %v1014
        %v1016 = vperm.slane %v1008, %v1015
        %v1017 = vrot.slane %v1012, 4
        %v1018 = vsel %vm741, %v1017, %v1000
        %v1019 = vrot.slane %v1000, 4
        %v1020 = vsel %vm741, %v1012, %v1019
        %v1022 = vunpack.c.l.s4 1934713408
        %v1023 = vunpack.c.0.s8 %v1022
        %v1024 = vperm.slane %v1018, %v1023
        %v1026 = vunpack.c.l.s4 1934713408
        %v1027 = vunpack.c.0.s8 %v1026
        %v1028 = vperm.slane %v1020, %v1027
        %v1029 = vrot.slane %v1016, 4
        %v1030 = vsel %vm741, %v1029, %v1004
        %v1031 = vrot.slane %v1004, 4
        %v1032 = vsel %vm741, %v1016, %v1031
        %v1034 = vunpack.c.l.s4 1934713408
        %v1035 = vunpack.c.0.s8 %v1034
        %v1036 = vperm.slane %v1030, %v1035
        %v1038 = vunpack.c.l.s4 1934713408
        %v1039 = vunpack.c.0.s8 %v1038
        %v1040 = vperm.slane %v1032, %v1039
        %v1041 = vrot.slane %v1024, 4
        %v1042 = vsel %vm741, 0.0, %v1041
        %v1043 = vrot.slane %v1028, 4
        %v1044 = vsel %vm741, 0.0, %v1043
        %v1045 = vrot.slane %v1036, 4
        %v1046 = vsel %vm741, 0.0, %v1045
        %v1047 = vrot.slane %v1040, 4
        %v1048 = vsel %vm741, 0.0, %v1047
        %v1049 = vsel %vm741, %v1043, %v1024
        %v1051 = vunpack.c.l.s4 1983009808
        %v1052 = vunpack.c.0.s8 %v1051
        %v1053 = vperm.slane %v1049, %v1052
        %v1054 = vrot.slane %v1044, 4
        %v1055 = vsel %vm741, %v1054, %v1042
        %v1057 = vunpack.c.l.s4 1983009808
        %v1058 = vunpack.c.0.s8 %v1057
        %v1059 = vperm.slane %v1055, %v1058
        %v1060 = vsel %vm741, %v1047, %v1036
        %v1062 = vunpack.c.l.s4 1983009808
        %v1063 = vunpack.c.0.s8 %v1062
        %v1064 = vperm.slane %v1060, %v1063
        %v1065 = vrot.slane %v1048, 4
        %v1066 = vsel %vm741, %v1065, %v1046
        %v1068 = vunpack.c.l.s4 1983009808
        %v1069 = vunpack.c.0.s8 %v1068
        %v1070 = vperm.slane %v1066, %v1069
        %v1071 = vrot.slane %v1059, 4
        %v1072 = vsel %vm741, %v1071, %v1053
        %v1073 = vrot.slane %v1053, 4
        %v1074 = vsel %vm741, %v1059, %v1073
        %v1076 = vunpack.c.l.s4 1934713408
        %v1077 = vunpack.c.0.s8 %v1076
        %v1078 = vperm.slane %v1072, %v1077
        %v1080 = vunpack.c.l.s4 1934713408
        %v1081 = vunpack.c.0.s8 %v1080
        %v1082 = vperm.slane %v1074, %v1081
        %v1083 = vrot.slane %v1070, 4
        %v1084 = vsel %vm741, %v1083, %v1064
        %v1085 = vrot.slane %v1064, 4
        %v1086 = vsel %vm741, %v1070, %v1085
        %v1088 = vunpack.c.l.s4 1934713408
        %v1089 = vunpack.c.0.s8 %v1088
        %v1090 = vperm.slane %v1084, %v1089
        %v1092 = vunpack.c.l.s4 1934713408
        %v1093 = vunpack.c.0.s8 %v1092
        %v1094 = vperm.slane %v1086, %v1093
        %v1095 = vrot.slane %v1090, 4
        %v1096 = vsel %vm741, %v1095, %v1078
        %v1097 = vrot.slane %v1078, 4
        %v1098 = vsel %vm741, %v1090, %v1097
        %v1099 = vrot.slane %v1094, 4
        %v1100 = vsel %vm741, %v1099, %v1082
        %v1101 = vrot.slane %v1082, 4
        %v1102 = vsel %vm741, %v1094, %v1101
        %v1103 = vpack.c.bf16 %v1096, %v1096
        %v1104 = vpack.c.bf16 %v1098, %v1098
        %v1105 = vpack.c.bf16 %v1100, %v1100
        %v1106 = vpack.c.bf16 %v1102, %v1102
        %v1108 = vperm.slane %v692, 0
        %vm1110 = vcmask 64512
        %v1112 = vsel %vm1110, %v851, 0
        %v1115 = vsel %vm1110, %v977, 0
        %1117 = vmatpush.bf16.xpose.msra.mxu0 0
        %1118 = vmatpush.bf16.xpose.msra.mxu0 0
        %1119 = vmatpush.bf16.xpose.msra.mxu0 0
        %1120 = vmatpush.bf16.xpose.msra.mxu0 0
        %1121 = vmatpush.bf16.xpose.msra.mxu0 0
        %1122 = vmatpush.bf16.xpose.msra.mxu0 0
        %1123 = vmatpush.bf16.xpose.msra.mxu0 0
        %1124 = vmatpush.bf16.xpose.msra.mxu0 %v1115
        %1125 = vmatmul.bf16.gmra.mxu0 %v1112
        %v1126 = vpop.f32.mrf.mxu0
        %v1127 = vadd.f32 %v1108, %v1126
        %v1128 = vpop.f32.mrf.mxu0
        %1129 = vdwg.mxu0
        %v1131 = vsel %vm1110, %v852, 0
        %v1134 = vsel %vm1110, %v978, 0
        %1136 = vmatpush.bf16.xpose.msra.mxu0 0
        %1137 = vmatpush.bf16.xpose.msra.mxu0 0
        %1138 = vmatpush.bf16.xpose.msra.mxu0 0
        %1139 = vmatpush.bf16.xpose.msra.mxu0 0
        %1140 = vmatpush.bf16.xpose.msra.mxu0 0
        %1141 = vmatpush.bf16.xpose.msra.mxu0 0
        %1142 = vmatpush.bf16.xpose.msra.mxu0 0
        %1143 = vmatpush.bf16.xpose.msra.mxu0 %v1134
        %1144 = vmatmul.bf16.gmra.mxu0 %v1131
        %v1145 = vpop.f32.mrf.mxu0
        %v1146 = vadd.f32 %v1108, %v1145
        %v1147 = vpop.f32.mrf.mxu0
        %1148 = vdwg.mxu0
        %v1150 = vsel %vm1110, %v853, 0
        %v1153 = vsel %vm1110, %v979, 0
        %1155 = vmatpush.bf16.xpose.msra.mxu0 0
        %1156 = vmatpush.bf16.xpose.msra.mxu0 0
        %1157 = vmatpush.bf16.xpose.msra.mxu0 0
        %1158 = vmatpush.bf16.xpose.msra.mxu0 0
        %1159 = vmatpush.bf16.xpose.msra.mxu0 0
        %1160 = vmatpush.bf16.xpose.msra.mxu0 0
        %1161 = vmatpush.bf16.xpose.msra.mxu0 0
        %1162 = vmatpush.bf16.xpose.msra.mxu0 %v1153
        %1163 = vmatmul.bf16.gmra.mxu0 %v1150
        %v1164 = vpop.f32.mrf.mxu0
        %v1165 = vadd.f32 %v1108, %v1164
        %v1166 = vpop.f32.mrf.mxu0
        %1167 = vdwg.mxu0
        %v1169 = vsel %vm1110, %v854, 0
        %v1172 = vsel %vm1110, %v980, 0
        %1174 = vmatpush.bf16.xpose.msra.mxu0 0
        %1175 = vmatpush.bf16.xpose.msra.mxu0 0
        %1176 = vmatpush.bf16.xpose.msra.mxu0 0
        %1177 = vmatpush.bf16.xpose.msra.mxu0 0
        %1178 = vmatpush.bf16.xpose.msra.mxu0 0
        %1179 = vmatpush.bf16.xpose.msra.mxu0 0
        %1180 = vmatpush.bf16.xpose.msra.mxu0 0
        %1181 = vmatpush.bf16.xpose.msra.mxu0 %v1172
        %1182 = vmatmul.bf16.gmra.mxu0 %v1169
        %v1183 = vpop.f32.mrf.mxu0
        %v1184 = vadd.f32 %v1108, %v1183
        %v1185 = vpop.f32.mrf.mxu0
        %1186 = vdwg.mxu0
        %v1187 = vsel %vm1110, %v1127, -inf
        %1188 = vmax.xlane.f32.xlu0 %v1187
        %v1189 = vpop.xlane.xlu0 %1188
        %v1190 = vsel %vm1110, %v1146, -inf
        %1191 = vmax.xlane.f32.xlu0 %v1190
        %v1192 = vpop.xlane.xlu0 %1191
        %v1193 = vsel %vm1110, %v1165, -inf
        %1194 = vmax.xlane.f32.xlu0 %v1193
        %v1195 = vpop.xlane.xlu0 %1194
        %v1196 = vsel %vm1110, %v1184, -inf
        %1197 = vmax.xlane.f32.xlu0 %v1196
        %v1198 = vpop.xlane.xlu0 %1197
        %v1199 = vsub.f32 %v1127, %v1189
        %v1200 = vsub.f32 %v1146, %v1192
        %v1201 = vsub.f32 %v1165, %v1195
        %v1202 = vsub.f32 %v1184, %v1198
        %v1203 = vmul.f32 %v1199, 1.442695
        %v1204 = vpow.pop %v1203
        %v1205 = vmul.f32 %v1200, 1.442695
        %v1206 = vpow.pop %v1205
        %v1207 = vmul.f32 %v1201, 1.442695
        %v1208 = vpow.pop %v1207
        %v1209 = vmul.f32 %v1202, 1.442695
        %v1210 = vpow.pop %v1209
        %v1211 = vsel %vm1110, %v1204, 0.0
        %1212 = vadd.xlane.f32.xlu0 %v1211
        %v1213 = vpop.xlane.xlu0 %1212
        %v1214 = vsel %vm1110, %v1206, 0.0
        %1215 = vadd.xlane.f32.xlu0 %v1214
        %v1216 = vpop.xlane.xlu0 %1215
        %v1217 = vsel %vm1110, %v1208, 0.0
        %1218 = vadd.xlane.f32.xlu0 %v1217
        %v1219 = vpop.xlane.xlu0 %1218
        %v1220 = vsel %vm1110, %v1210, 0.0
        %1221 = vadd.xlane.f32.xlu0 %v1220
        %v1222 = vpop.xlane.xlu0 %1221
        %v1223 = vrcp.pop %v1213
        %v1224 = vrcp.pop %v1216
        %v1225 = vrcp.pop %v1219
        %v1226 = vrcp.pop %v1222
        %v1227 = vmul.f32 %v1204, %v1223
        %v1228 = vmul.f32 %v1206, %v1224
        %v1229 = vmul.f32 %v1208, %v1225
        %v1230 = vmul.f32 %v1210, %v1226
        %v1231 = vpack.c.bf16 %v1227, %v1227
        %v1232 = vpack.c.bf16 %v1228, %v1228
        %v1233 = vpack.c.bf16 %v1229, %v1229
        %v1234 = vpack.c.bf16 %v1230, %v1230
        %v1236 = vsel %vm1110, %v1231, 0
        %vm1238 = vcmask 1043456
        %v1240 = vsel %vm1238, %v1103, 0
        %1242 = vmatpush.bf16.msra.mxu0 0
        %1243 = vmatpush.bf16.msra.mxu0 0
        %1244 = vmatpush.bf16.msra.mxu0 0
        %1245 = vmatpush.bf16.msra.mxu0 0
        %1246 = vmatpush.bf16.msra.mxu0 0
        %1247 = vmatpush.bf16.msra.mxu0 0
        %1248 = vmatpush.bf16.msra.mxu0 0
        %1249 = vmatpush.bf16.msra.mxu0 %v1240
        %1250 = vmatmul.bf16.gmra.mxu0 %v1236
        %v1251 = vpop.f32.mrf.mxu0
        %v1252 = vadd.f32 0.0, %v1251
        %v1253 = vpop.f32.mrf.mxu0
        %1254 = vdwg.mxu0
        %v1256 = vsel %vm1110, %v1232, 0
        %v1259 = vsel %vm1238, %v1104, 0
        %1261 = vmatpush.bf16.msra.mxu0 0
        %1262 = vmatpush.bf16.msra.mxu0 0
        %1263 = vmatpush.bf16.msra.mxu0 0
        %1264 = vmatpush.bf16.msra.mxu0 0
        %1265 = vmatpush.bf16.msra.mxu0 0
        %1266 = vmatpush.bf16.msra.mxu0 0
        %1267 = vmatpush.bf16.msra.mxu0 0
        %1268 = vmatpush.bf16.msra.mxu0 %v1259
        %1269 = vmatmul.bf16.gmra.mxu0 %v1256
        %v1270 = vpop.f32.mrf.mxu0
        %v1271 = vadd.f32 0.0, %v1270
        %v1272 = vpop.f32.mrf.mxu0
        %1273 = vdwg.mxu0
        %v1275 = vsel %vm1110, %v1233, 0
        %v1278 = vsel %vm1238, %v1105, 0
        %1280 = vmatpush.bf16.msra.mxu0 0
        %1281 = vmatpush.bf16.msra.mxu0 0
        %1282 = vmatpush.bf16.msra.mxu0 0
        %1283 = vmatpush.bf16.msra.mxu0 0
        %1284 = vmatpush.bf16.msra.mxu0 0
        %1285 = vmatpush.bf16.msra.mxu0 0
        %1286 = vmatpush.bf16.msra.mxu0 0
        %1287 = vmatpush.bf16.msra.mxu0 %v1278
        %1288 = vmatmul.bf16.gmra.mxu0 %v1275
        %v1289 = vpop.f32.mrf.mxu0
        %v1290 = vadd.f32 0.0, %v1289
        %v1291 = vpop.f32.mrf.mxu0
        %1292 = vdwg.mxu0
        %v1294 = vsel %vm1110, %v1234, 0
        %v1297 = vsel %vm1238, %v1106, 0
        %1299 = vmatpush.bf16.msra.mxu0 0
        %1300 = vmatpush.bf16.msra.mxu0 0
        %1301 = vmatpush.bf16.msra.mxu0 0
        %1302 = vmatpush.bf16.msra.mxu0 0
        %1303 = vmatpush.bf16.msra.mxu0 0
        %1304 = vmatpush.bf16.msra.mxu0 0
        %1305 = vmatpush.bf16.msra.mxu0 0
        %1306 = vmatpush.bf16.msra.mxu0 %v1297
        %1307 = vmatmul.bf16.gmra.mxu0 %v1294
        %v1308 = vpop.f32.mrf.mxu0
        %v1309 = vadd.f32 0.0, %v1308
        %v1310 = vpop.f32.mrf.mxu0
        %1311 = vdwg.mxu0
        %v1312 = vrot.slane %v1290, 4
        %v1313 = vsel %vm741, %v1312, %v1252
        %v1314 = vrot.slane %v1252, 4
        %v1315 = vsel %vm741, %v1290, %v1314
        %v1317 = vunpack.c.l.s4 1983009808
        %v1318 = vunpack.c.0.s8 %v1317
        %v1319 = vperm.slane %v1313, %v1318
        %v1321 = vunpack.c.l.s4 1983009808
        %v1322 = vunpack.c.0.s8 %v1321
        %v1323 = vperm.slane %v1315, %v1322
        %v1324 = vrot.slane %v1309, 4
        %v1325 = vsel %vm741, %v1324, %v1271
        %v1326 = vrot.slane %v1271, 4
        %v1327 = vsel %vm741, %v1309, %v1326
        %v1329 = vunpack.c.l.s4 1983009808
        %v1330 = vunpack.c.0.s8 %v1329
        %v1331 = vperm.slane %v1325, %v1330
        %v1333 = vunpack.c.l.s4 1983009808
        %v1334 = vunpack.c.0.s8 %v1333
        %v1335 = vperm.slane %v1327, %v1334
        %v1336 = vrot.slane %v1331, 4
        %v1337 = vsel %vm741, %v1336, %v1319
        %v1338 = vrot.slane %v1319, 4
        %v1339 = vsel %vm741, %v1331, %v1338
        %v1341 = vunpack.c.l.s4 1934713408
        %v1342 = vunpack.c.0.s8 %v1341
        %v1343 = vperm.slane %v1337, %v1342
        %v1345 = vunpack.c.l.s4 1934713408
        %v1346 = vunpack.c.0.s8 %v1345
        %v1347 = vperm.slane %v1339, %v1346
        %v1348 = vrot.slane %v1335, 4
        %v1349 = vsel %vm741, %v1348, %v1323
        %v1350 = vrot.slane %v1323, 4
        %v1351 = vsel %vm741, %v1335, %v1350
        %v1353 = vunpack.c.l.s4 1934713408
        %v1354 = vunpack.c.0.s8 %v1353
        %v1355 = vperm.slane %v1349, %v1354
        %v1357 = vunpack.c.l.s4 1934713408
        %v1358 = vunpack.c.0.s8 %v1357
        %v1359 = vperm.slane %v1351, %v1358
        %v1360 = vrot.slane %v1343, 4
        %v1361 = vsel %vm741, 0.0, %v1360
        %v1362 = vrot.slane %v1347, 4
        %v1363 = vsel %vm741, 0.0, %v1362
        %v1364 = vrot.slane %v1355, 4
        %v1365 = vsel %vm741, 0.0, %v1364
        %v1366 = vrot.slane %v1359, 4
        %v1367 = vsel %vm741, 0.0, %v1366
        %v1368 = vsel %vm741, %v1362, %v1343
        %v1370 = vunpack.c.l.s4 1983009808
        %v1371 = vunpack.c.0.s8 %v1370
        %v1372 = vperm.slane %v1368, %v1371
        %v1373 = vrot.slane %v1363, 4
        %v1374 = vsel %vm741, %v1373, %v1361
        %v1376 = vunpack.c.l.s4 1983009808
        %v1377 = vunpack.c.0.s8 %v1376
        %v1378 = vperm.slane %v1374, %v1377
        %v1379 = vsel %vm741, %v1366, %v1355
        %v1381 = vunpack.c.l.s4 1983009808
        %v1382 = vunpack.c.0.s8 %v1381
        %v1383 = vperm.slane %v1379, %v1382
        %v1384 = vrot.slane %v1367, 4
        %v1385 = vsel %vm741, %v1384, %v1365
        %v1387 = vunpack.c.l.s4 1983009808
        %v1388 = vunpack.c.0.s8 %v1387
        %v1389 = vperm.slane %v1385, %v1388
        %v1390 = vrot.slane %v1378, 4
        %v1391 = vsel %vm741, %v1390, %v1372
        %v1392 = vrot.slane %v1372, 4
        %v1393 = vsel %vm741, %v1378, %v1392
        %v1395 = vunpack.c.l.s4 1934713408
        %v1396 = vunpack.c.0.s8 %v1395
        %v1397 = vperm.slane %v1391, %v1396
        %v1399 = vunpack.c.l.s4 1934713408
        %v1400 = vunpack.c.0.s8 %v1399
        %v1401 = vperm.slane %v1393, %v1400
        %v1402 = vrot.slane %v1389, 4
        %v1403 = vsel %vm741, %v1402, %v1383
        %v1404 = vrot.slane %v1383, 4
        %v1405 = vsel %vm741, %v1389, %v1404
        %v1407 = vunpack.c.l.s4 1934713408
        %v1408 = vunpack.c.0.s8 %v1407
        %v1409 = vperm.slane %v1403, %v1408
        %v1411 = vunpack.c.l.s4 1934713408
        %v1412 = vunpack.c.0.s8 %v1411
        %v1413 = vperm.slane %v1405, %v1412
        %v1414 = vrot.slane %v1409, 4
        %v1415 = vsel %vm741, %v1414, %v1397
        %v1416 = vrot.slane %v1397, 4
        %v1417 = vsel %vm741, %v1409, %v1416
        %v1418 = vrot.slane %v1413, 4
        %v1419 = vsel %vm741, %v1418, %v1401
        %v1420 = vrot.slane %v1401, 4
        %v1421 = vsel %vm741, %v1413, %v1420
        %1423 = vrot.lane.b32.xlu0 %v1417, 8
        %v1424 = vpop.permute.xlu0 %1423
        %1427 = vrot.lane.b32.xlu0 %v1419, 16
        %v1428 = vpop.permute.xlu0 %1427
        %1431 = vrot.lane.b32.xlu0 %v1421, 24
        %v1432 = vpop.permute.xlu0 %1431
        %v1434 = vsel %vm1110, %v1415, %v1424
        %vm1435 = vcmask 130048
        %v1436 = vsel %vm1435, %v1434, %v1428
        %vm1437 = vcmask 195584
        %v1438 = vsel %vm1437, %v1436, %v1432
        %v1439 = vpack.c.bf16 %v1438, %v1438
        %v1440 = vld [vmem:[%s649] sm:$0xf]
        %v1441 = vld [vmem:[%s649 + $0x4] sm:$0xf]
        %v1442 = vld [vmem:[%s649 + $0x8] sm:$0xf]
        %v1443 = vld [vmem:[%s649 + $0xc] sm:$0xf]
        %v1444 = vld [vmem:[%s652] sm:$0x1]
        %v1446 = vperm.slane %v1444, 0
        %v1452 = vunpack.c.l.b16 %v1440
        %v1453 = vunpack.c.l.b16 %v1441
        %v1454 = vunpack.c.l.b16 %v1442
        %v1455 = vunpack.c.l.b16 %v1443
        %v1456 = vpack.c.b16 %v1453, %v1452
        %v1457 = vpack.c.b16 %v1455, %v1454
        %v1461 = vsel %vm713, %v1439, 0
        %1463 = vmatpush.bf16.msra.mxu0 0
        %1464 = vmatpush.bf16.msra.mxu0 0
        %1465 = vmatpush.bf16.msra.mxu0 0
        %1466 = vmatpush.bf16.msra.mxu0 0
        %1467 = vmatpush.bf16.msra.mxu0 0
        %1468 = vmatpush.bf16.msra.mxu0 0
        %1469 = vmatpush.bf16.msra.mxu0 %v1457
        %1470 = vmatpush.bf16.msra.mxu0 %v1456
        %1471 = vmatmul.bf16.gmra.mxu0 %v1461
        %v1472 = vpop.f32.mrf.mxu0
        %v1473 = vadd.f32 %v1446, %v1472
        %v1474 = vpop.f32.mrf.mxu0
        %1475 = vdwg.mxu0
        %v1476 = vadd.f32 %v690, %v1473
        %v1477 = vld [vmem:[%s655] sm:$0x1]
        %v1478 = vld [vmem:[%s658] sm:$0x1]
        %v1479 = vsel %vm713, %v1476, 0.0
        %1480 = vadd.xlane.f32.xlu0 %v1479
        %v1481 = vpop.xlane.xlu0 %1480
        %v1482 = vrcp.pop 32.0
        %v1483 = vmul.f32 32.0, %v1482
        %v1484 = vsub.f32 1.0, %v1483
        %v1485 = vmul.f32 %v1482, %v1484
        %v1486 = vadd.f32 %v1482, %v1485
        %vm1487 = vweird.f32 %v1482
        %v1488 = vsel %vm1487, %v1482, %v1486
        %v1489 = vmul.f32 %v1481, %v1488
        %v1490 = vsub.f32 %v1476, %v1489
        %v1491 = vmul.f32 %v1490, %v1490
        %v1492 = vsel %vm713, %v1491, 0.0
        %1493 = vadd.xlane.f32.xlu0 %v1492
        %v1494 = vpop.xlane.xlu0 %1493
        %v1495 = vmul.f32 %v1494, %v1488
        %v1496 = vadd.f32 %v1495, 1e-12
        %v1497 = vrsqrt.pop %v1496
        %v1498 = vmul.f32 %v1497, %v1496
        %v1499 = vmul.f32 %v1498, %v1497
        %v1500 = vmul.f32 0.5, %v1499
        %v1501 = vsub.f32 1.5, %v1500
        %v1502 = vmul.f32 %v1497, %v1501
        %vm1503 = vweird.f32 %v1496
        %vm1504 = vweird.f32 %v1497
        %vm1505 = vmor %vm1503, %vm1504
        %v1506 = vsel %vm1505, %v1497, %v1502
        %v1507 = vmul.f32 %v1490, %v1506
        %v1509 = vperm.slane %v1477, 0
        %v1511 = vmul.f32 %v1507, %v1509
        %v1513 = vperm.slane %v1478, 0
        %v1515 = vadd.f32 %v1511, %v1513
        %v1516 = vpack.c.bf16 %v1515, %v1515
        %v1517 = vld [vmem:[%s663] sm:$0xf]
        %v1518 = vld [vmem:[%s663 + $0x4] sm:$0xf]
        %v1519 = vld [vmem:[%s663 + $0x8] sm:$0xf]
        %v1520 = vld [vmem:[%s663 + $0xc] sm:$0xf]
        %v1521 = vld [vmem:[%s666] sm:$0x1]
        %v1523 = vperm.slane %v1521, 0
        %v1529 = vunpack.c.l.b16 %v1517
        %v1530 = vunpack.c.l.b16 %v1518
        %v1531 = vunpack.c.l.b16 %v1519
        %v1532 = vunpack.c.l.b16 %v1520
        %v1533 = vpack.c.b16 %v1530, %v1529
        %v1534 = vpack.c.b16 %v1532, %v1531
        %v1538 = vsel %vm713, %v1516, 0
        %1540 = vmatpush.bf16.msra.mxu0 0
        %1541 = vmatpush.bf16.msra.mxu0 0
        %1542 = vmatpush.bf16.msra.mxu0 0
        %1543 = vmatpush.bf16.msra.mxu0 0
        %1544 = vmatpush.bf16.msra.mxu0 0
        %1545 = vmatpush.bf16.msra.mxu0 0
        %1546 = vmatpush.bf16.msra.mxu0 %v1534
        %1547 = vmatpush.bf16.msra.mxu0 %v1533
        %1548 = vmatmul.bf16.gmra.mxu0 %v1538
        %v1549 = vpop.f32.mrf.mxu0
        %v1550 = vadd.f32 %v1523, %v1549
        %v1551 = vpop.f32.mrf.mxu0
        %1552 = vdwg.mxu0
        %v1553 = vmul.f32 %v1550, %v1550
        %v1554 = vmul.f32 %v1550, %v1553
        %v1555 = vmul.f32 %v1554, 0.044715
        %v1556 = vadd.f32 %v1550, %v1555
        %v1557 = vmul.f32 %v1556, 0.7978846
        %v1558 = vtanh.pop %v1557
        %v1559 = vadd.f32 %v1558, 1.0
        %v1560 = vmul.f32 %v1559, 0.5
        %v1561 = vmul.f32 %v1550, %v1560
        %v1562 = vpack.c.bf16 %v1561, %v1561
        %v1563 = vld [vmem:[%s671] sm:$0xf]
        %v1564 = vld [vmem:[%s671 + $0x4] sm:$0xf]
        %v1565 = vld [vmem:[%s671 + $0x8] sm:$0xf]
        %v1566 = vld [vmem:[%s671 + $0xc] sm:$0xf]
        %v1567 = vld [vmem:[%s671 + $0x10] sm:$0xf]
        %v1568 = vld [vmem:[%s671 + $0x14] sm:$0xf]
        %v1569 = vld [vmem:[%s671 + $0x18] sm:$0xf]
        %v1570 = vld [vmem:[%s671 + $0x1c] sm:$0xf]
        %v1571 = vld [vmem:[%s671 + $0x20] sm:$0xf]
        %v1572 = vld [vmem:[%s671 + $0x24] sm:$0xf]
        %v1573 = vld [vmem:[%s671 + $0x28] sm:$0xf]
        %v1574 = vld [vmem:[%s671 + $0x2c] sm:$0xf]
        %v1575 = vld [vmem:[%s671 + $0x30] sm:$0xf]
        %v1576 = vld [vmem:[%s671 + $0x34] sm:$0xf]
        %v1577 = vld [vmem:[%s671 + $0x38] sm:$0xf]
        %v1578 = vld [vmem:[%s671 + $0x3c] sm:$0xf]
        %v1579 = vld [vmem:[%s674] sm:$0x1]
        %v1581 = vperm.slane %v1579, 0
        %v1599 = vunpack.c.l.b16 %v1563
        %v1600 = vunpack.c.l.b16 %v1564
        %v1601 = vunpack.c.l.b16 %v1565
        %v1602 = vunpack.c.l.b16 %v1566
        %v1603 = vunpack.c.l.b16 %v1567
        %v1604 = vunpack.c.l.b16 %v1568
        %v1605 = vunpack.c.l.b16 %v1569
        %v1606 = vunpack.c.l.b16 %v1570
        %v1607 = vunpack.c.l.b16 %v1571
        %v1608 = vunpack.c.l.b16 %v1572
        %v1609 = vunpack.c.l.b16 %v1573
        %v1610 = vunpack.c.l.b16 %v1574
        %v1611 = vunpack.c.l.b16 %v1575
        %v1612 = vunpack.c.l.b16 %v1576
        %v1613 = vunpack.c.l.b16 %v1577
        %v1614 = vunpack.c.l.b16 %v1578
        %v1615 = vpack.c.b16 %v1600, %v1599
        %v1616 = vpack.c.b16 %v1602, %v1601
        %v1617 = vpack.c.b16 %v1604, %v1603
        %v1618 = vpack.c.b16 %v1606, %v1605
        %v1619 = vpack.c.b16 %v1608, %v1607
        %v1620 = vpack.c.b16 %v1610, %v1609
        %v1621 = vpack.c.b16 %v1612, %v1611
        %v1622 = vpack.c.b16 %v1614, %v1613
        %1631 = vmatpush.bf16.msra.mxu0 %v1622
        %1632 = vmatpush.bf16.msra.mxu0 %v1621
        %1633 = vmatpush.bf16.msra.mxu0 %v1620
        %1634 = vmatpush.bf16.msra.mxu0 %v1619
        %1635 = vmatpush.bf16.msra.mxu0 %v1618
        %1636 = vmatpush.bf16.msra.mxu0 %v1617
        %1637 = vmatpush.bf16.msra.mxu0 %v1616
        %1638 = vmatpush.bf16.msra.mxu0 %v1615
        %1639 = vmatmul.bf16.gmra.mxu0 %v1562
        %v1640 = vpop.f32.mrf.mxu0
        %v1641 = vadd.f32 %v1581, %v1640
        %v1642 = vpop.f32.mrf.mxu0
        %1643 = vdwg.mxu0
        %v1644 = vadd.f32 %v1515, %v1641
        %v1645 = vld [vmem:[%s677] sm:$0x1]
        %v1646 = vld [vmem:[%s680] sm:$0x1]
        %v1647 = vsel %vm713, %v1644, 0.0
        %1648 = vadd.xlane.f32.xlu0 %v1647
        %v1649 = vpop.xlane.xlu0 %1648
        %v1650 = vmul.f32 %v1649, %v1488
        %v1651 = vsub.f32 %v1644, %v1650
        %v1652 = vmul.f32 %v1651, %v1651
        %v1653 = vsel %vm713, %v1652, 0.0
        %1654 = vadd.xlane.f32.xlu0 %v1653
        %v1655 = vpop.xlane.xlu0 %1654
        %v1656 = vmul.f32 %v1655, %v1488
        %v1657 = vadd.f32 %v1656, 1e-12
        %v1658 = vrsqrt.pop %v1657
        %v1659 = vmul.f32 %v1658, %v1657
        %v1660 = vmul.f32 %v1659, %v1658
        %v1661 = vmul.f32 0.5, %v1660
        %v1662 = vsub.f32 1.5, %v1661
        %v1663 = vmul.f32 %v1658, %v1662
        %vm1664 = vweird.f32 %v1657
        %vm1665 = vweird.f32 %v1658
        %vm1666 = vmor %vm1664, %vm1665
        %v1667 = vsel %vm1666, %v1658, %v1663
        %v1668 = vmul.f32 %v1651, %v1667
        %v1670 = vperm.slane %v1645, 0
        %v1672 = vmul.f32 %v1668, %v1670
        %v1674 = vperm.slane %v1646, 0
        %v1676 = vadd.f32 %v1672, %v1674
        %1677 = vst.msk [vmem:[#allocation2] sm:$0xff] %vm713, %v1676
        %v1678 = vlaneseq
        %v1679 = vshrl.u32 %v1678, 7
        %v1680 = vpack.c.bf16 %v1676, %v1676
        %v1681 = vstv %s33
        %vm1682 = vcmp.eq.s32.totalorder %v1679, %v1681
        %v1683 = vld [vmem:[%s629] sm:$0x3]
        %v1685 = vpack.i.b16 %v1680, %v1680
        %v1687 = vperm.slane %v1685, 0
        %vm1688 = vmpackc.low %vm1682, %vm1682
        %v1689 = vsel %vm1688, %v1687, %v1683
        %vm1690 = vcmask 254976
        %1691 = vst.msk [vmem:[%s629] sm:$0x3] %vm1690, %v1689
        %s1692 = sand.u32 %s412, 1
        %s1693 = scalar_lea.sflag [#allocation4], %s1692
        %s1694 = sand.u32 %s412, 1
        %s1695 = smul.addr %s1694, 2
        %s1696 = scalar_lea.vmem [#allocation3], %s1695
        // Predicated region
        $region81: #{tpu_custom_call.1} parent=75 // pred_check
          %p1697 = pneg %p422
        $region82: #{tpu_custom_call.1} parent=75 // pred_check_branch
          %1699 = sbr.rel (%p1697) target = $region84
        $region83: #{tpu_custom_call.1} parent=75 // pred_region
          %1701 = vsyncadd %s1693, 0
          %s1702 = smul.addr %s32, 2
          %s1703 = scalar_lea.hbm %s14, %s1702
          %s1705 = sshll.u32 %s1696, 4
          %s1706 = int_to_ptr.vmem [resolvable:$true] %s1705
          %s1707 = sshll.u32 %s1703, 4
          %s1708 = int_to_ptr.hbm [resolvable:$true] %s1707
          %1710 = dma.vmem_to_hbm [thread:$0]  %s1706, 32, %s1708, %s1693
        $region84: #{tpu_custom_call.1} parent=75 // pred_fallthru
          _
      $region76: #{tpu_custom_call.1} parent=5 // pred_fallthru
        _
      %p1711 = scmp.le.s32.totalorder 2, %s23
      // Predicated region
      $region85: #{tpu_custom_call.1} parent=5 // pred_check
        %p1712 = pneg %p1711
      $region86: #{tpu_custom_call.1} parent=5 // pred_check_branch
        %1714 = sbr.rel (%p1712) target = $region88
      $region87: #{tpu_custom_call.1} parent=5 // pred_region
        %s1715 = ssub.s32 %s23, 2
        // Predicated region
        $region89: #{tpu_custom_call.1} parent=87 // pred_check
          %p1716 = pneg %p428
        $region90: #{tpu_custom_call.1} parent=87 // pred_check_branch
          %1718 = sbr.rel (%p1716) target = $region92
        $region91: #{tpu_custom_call.1} parent=87 // pred_region
          %s1719 = sand.u32 %s413, 1
          %s1720 = scalar_lea.sflag [#allocation4], %s1719
          %s1721 = sand.u32 %s413, 1
          %s1722 = smul.addr %s1721, 2
          %s1723 = scalar_lea.vmem [#allocation3], %s1722
          %1725 = dma.done %s1720, 32
        $region92: #{tpu_custom_call.1} parent=87 // pred_fallthru
          _
      $region88: #{tpu_custom_call.1} parent=5 // pred_fallthru
        _
    $region6: #{tpu_custom_call.1} parent=1 // loop_footer
      %s27 = sadd.s32 1, %s23
    $region7: #{tpu_custom_call.1} parent=1 // loop_footer_branch
      %22 = sbr.rel target = $region3
    $region8: #{tpu_custom_call.1} parent=1 // loop_exit
      _
    %1726 = vsyncpa [#allocation4], 1
    %s1727 = scalar_lea.sflag [#allocation4], 1
    %1728 = vsyncpa %s1727, 1

</llo_original>
